<compile_context>
chip_gen: v6e
topology: v6e:2x2x1
jax: 0.10.0
libtpu: 0.0.40
codegen_flags: <defaults>
</compile_context>

<pallas_src>
import jax
import jax.numpy as jnp
from jax.experimental import pallas as pl
from jax.experimental.pallas import tpu as pltpu


def _round_up(x, m):
    return (x + m - 1) // m * m


def _pick_tile(n_pad, max_tile, min_blocks=1):
    """Largest multiple of 128 that divides n_pad, <= max_tile, and (when
    possible) leaves at least `min_blocks` blocks along that axis."""
    cap = min(int(max_tile), n_pad)
    if min_blocks > 1 and n_pad >= min_blocks * 128:
        cap = min(cap, (n_pad // min_blocks) // 128 * 128)
    cap = max(cap, 128)
    best, t = 128, 128
    while t <= cap:
        if n_pad % t == 0:
            best = t
        t += 128
    return best


def _vmem_cap_bytes():
    # 48 MiB leaves headroom on v7x (64 MiB physical per TC); allow more on
    # v5e/v6e (128 MiB physical) when the runtime reports capacity.
    cap = 48 << 20
    try:
        info = pltpu.get_tpu_info()
        cap = max(32 << 20, min(int(info.vmem_capacity_bytes) * 3 // 4, 96 << 20))
    except Exception:
        pass
    return cap


def _vmem_limit_bytes(tm, tk, in_p, out_p, n_out_p, order, adj_itemsize):
    est = (
        2 * tm * tk * adj_itemsize              # adj tile stream (double buffered)
        + 2 * tk * max(in_p, out_p) * 2         # HW / h k-stream (bf16)
        + 2 * order * tm * in_p * 2             # hi row blocks (bf16)
        + 2 * tm * 4                            # dnorm rows
        + 2 * order * in_p * out_p * 2          # resident W_k (bf16)
        + 2 * (order + 1) * out_p * 4           # resident b_k (f32)
        + 2 * tm * n_out_p * 4                  # output block (f32)
        + tm * max(in_p, out_p) * 4             # f32 accumulator scratch
    )
    return int(min(max(2 * est, 16 << 20), _vmem_cap_bytes()))


def _match_dtypes(a, b):
    """Harmonize dot operand dtypes at trace time (e.g. f32 adj x bf16 feats)."""
    if a.dtype == b.dtype:
        return a, b
    wide = jnp.promote_types(a.dtype, b.dtype)
    return a.astype(wide), b.astype(wide)


def prepare_adjacency(adj, *, dtype=jnp.bfloat16, pad_to=128):
    """Pad [N, N] adjacency to a multiple of `pad_to` and cast ONCE.

    GraphSAINT's adjacency is static per sampled subgraph, so this should be
    done once and reused across layers / forwards (the per-forward pad+cast
    pass was ~3x the kernel's own adjacency HBM traffic).  bf16 is exact for
    0/1 edge weights; pass dtype=jnp.float32 if the edge weights are not
    bf16-representable (the kernels handle either dtype).
    """
    # TODO(synk): on v7x with strictly 0/1 weights, an fp8 (e4m3) adjacency
    # would halve the dominant stream if the mixed fp8 x bf16 dot lowers.
    n = adj.shape[0]
    n_pad = _round_up(n, pad_to)
    a = jnp.asarray(adj).astype(dtype)
    if n_pad != n:
        a = jnp.zeros((n_pad, n_pad), dtype).at[:n, :n].set(a)
    return a


# --------------------------------------------------------------------------
# Kernel 1: one message-passing hop   h_next = dnorm * (A @ h)
# (only needed for order >= 2; the last hop is fused into kernel 2)
# --------------------------------------------------------------------------
def _propagate_kernel(adj_ref, dnorm_ref, h_ref, out_ref, acc_ref):
    k = pl.program_id(1)

    @pl.when(k == 0)
    def _init():
        acc_ref[...] = jnp.zeros_like(acc_ref)

    adj_t, h_t = _match_dtypes(adj_ref[...], h_ref[...])
    acc_ref[...] += jnp.dot(adj_t, h_t, preferred_element_type=jnp.float32)

    @pl.when(k == pl.num_programs(1) - 1)
    def _finalize():
        # f32 accumulation, bf16 store (feeds the next kernel directly).
        out_ref[...] = (acc_ref[...] * dnorm_ref[...]).astype(out_ref.dtype)


def _propagate(adj_p, dn_p, h_bf16, tm, tk, vmem_limit):
    n_pad, feat = h_bf16.shape
    return pl.pallas_call(
        _propagate_kernel,
        out_shape=jax.ShapeDtypeStruct((n_pad, feat), jnp.bfloat16),
        grid_spec=pltpu.PrefetchScalarGridSpec(
            num_scalar_prefetch=0,
            grid=(n_pad // tm, n_pad // tk),
            in_specs=[
                pl.BlockSpec((tm, tk), lambda i, k: (i, k)),     # adj tile (stream)
                pl.BlockSpec((tm, 1), lambda i, k: (i, 0)),      # dnorm rows
                pl.BlockSpec((tk, feat), lambda i, k: (k, 0)),   # h rows (k stream)
            ],
            out_specs=pl.BlockSpec((tm, feat), lambda i, k: (i, 0)),
            scratch_shapes=[pltpu.VMEM((tm, feat), jnp.float32)],
        ),
        compiler_params=pltpu.CompilerParams(
            dimension_semantics=("parallel", "arbitrary"),
            vmem_limit_bytes=vmem_limit,
        ),
    )(adj_p, dn_p, h_bf16)


# --------------------------------------------------------------------------
# Kernel 2: last hop (pre-multiplied by W_last) + per-hop linears + aggregation
#   part_order = dnorm * (A @ HW) + b_order     with HW = h_{order-1} @ W_order
# --------------------------------------------------------------------------
def _make_fused_kernel(order, out_p, aggr):
    n_in = 3 * order + 4  # adj, dnorm, h_0..h_{order-1}, HW, W_0..W_{order-1}, b_0..b_order

    def kernel(*refs):
        adj_ref, dnorm_ref = refs[0], refs[1]
        hi_refs = refs[2:2 + order]                 # h_0..h_{order-1} row blocks (bf16)
        hw_ref = refs[2 + order]                    # HW k-stream (bf16)
        w_refs = refs[3 + order:3 + 2 * order]      # W_0..W_{order-1} (bf16, resident)
        b_refs = refs[3 + 2 * order:n_in]           # b_0..b_order (f32, resident)
        out_ref = refs[n_in]
        acc_ref = refs[n_in + 1]

        k = pl.program_id(1)

        @pl.when(k == 0)
        def _init():
            acc_ref[...] = jnp.zeros_like(acc_ref)

        adj_t, hw_t = _match_dtypes(adj_ref[...], hw_ref[...])
        acc_ref[...] += jnp.dot(adj_t, hw_t, preferred_element_type=jnp.float32)

        @pl.when(k == pl.num_programs(1) - 1)
        def _finalize():
            last = acc_ref[...] * dnorm_ref[...] + b_refs[order][...]
            if aggr == "concat":
                # Compute-then-store each part immediately (low live-value
                # pressure); out_p is a 128-multiple -> lane-dense stores.
                for idx in range(order):
                    p = jnp.dot(hi_refs[idx][...], w_refs[idx][...],
                                preferred_element_type=jnp.float32) + b_refs[idx][...]
                    out_ref[:, idx * out_p:(idx + 1) * out_p] = p.astype(out_ref.dtype)
                out_ref[:, order * out_p:(order + 1) * out_p] = last.astype(out_ref.dtype)
            else:  # 'mean' in the module is a plain sum of the per-hop parts
                s = last
                for idx in range(order):
                    s = s + jnp.dot(hi_refs[idx][...], w_refs[idx][...],
                                    preferred_element_type=jnp.float32) + b_refs[idx][...]
                out_ref[...] = s.astype(out_ref.dtype)

    return kernel


# --------------------------------------------------------------------------
# Wrapper
# --------------------------------------------------------------------------
def gcn_layer_forward(adj, dnorm, x, weights, biases, *, order=1,
                      aggr="concat", tile_m=512, tile_k=512):
    """Forward of GraphSAINT GCNLayer (default config: act=None, dropout=0,
    batch_norm=False).  `weights[k]` is the pre-transposed [in_dim, out_dim]
    Linear weight, `biases[k]` is [out_dim].  `adj` may be either the raw
    [N, N] adjacency or (preferably) the output of `prepare_adjacency`, which
    amortizes the pad+cast across layers / steps."""
    assert order >= 1, "order must be >= 1"
    assert aggr in ("concat", "mean")
    assert len(weights) == order + 1 and len(biases) == order + 1
    # TODO(synk): dropout>0 / act / batch_norm branches (config-off by default
    # in the module) are not implemented.

    n, in_dim = x.shape
    out_dim = weights[0].shape[1]
    in_p = _round_up(in_dim, 128)
    out_p = _round_up(out_dim, 128)

    adj_arr = jnp.asarray(adj)
    n_pad_min = _round_up(n, 128)
    if (adj_arr.ndim == 2 and adj_arr.shape[0] == adj_arr.shape[1]
            and adj_arr.shape[0] >= n_pad_min and adj_arr.shape[0] % 128 == 0):
        adj_p = adj_arr                          # already prepared (amortized path)
    else:
        adj_p = prepare_adjacency(adj_arr)       # fallback: pad+cast per call
    n_pad = adj_p.shape[0]

    # Tile selection: divisors of n_pad (multiples of 128); >= 2 row blocks
    # when possible so the "parallel" i axis shards across v7x's 2 TensorCores.
    tm = _pick_tile(n_pad, tile_m, min_blocks=2)
    tk = _pick_tile(n_pad, tile_k, min_blocks=1)

    n_out_p = (order + 1) * out_p if aggr == "concat" else out_p
    vmem_limit = _vmem_limit_bytes(tm, tk, in_p, out_p, n_out_p, order,
                                   jnp.dtype(adj_p.dtype).itemsize)

    # ---- pad & cast the small operands (tiny next to the N x N adjacency) --
    x_p = jnp.zeros((n_pad, in_p), jnp.bfloat16).at[:n, :in_dim].set(
        x.astype(jnp.bfloat16))
    dn_p = jnp.ones((n_pad, 1), jnp.float32).at[:n, :].set(
        jnp.asarray(dnorm, jnp.float32).reshape(n, 1))

    w_bf, b_f32 = [], []
    for w, b in zip(weights, biases):
        w_p = jnp.zeros((in_p, out_p), jnp.bfloat16).at[:in_dim, :out_dim].set(
            jnp.asarray(w, jnp.float32).astype(jnp.bfloat16))
        b_p = jnp.zeros((1, out_p), jnp.float32).at[0, :out_dim].set(
            jnp.asarray(b, jnp.float32).reshape(-1))
        w_bf.append(w_p)
        b_f32.append(b_p)

    # ---- hop features h_0..h_{order-1} (bf16); last hop is fused below -----
    hops = [x_p]
    for _ in range(order - 1):
        hops.append(_propagate(adj_p, dn_p, hops[-1], tm, tk, vmem_limit))

    # HW = h_{order-1} @ W_order, hoisted out of the per-(i,k) kernel body:
    # computed once here and streamed as a (tk, out_p) bf16 k-operand.
    hw = jnp.dot(hops[-1], w_bf[order],
                 preferred_element_type=jnp.float32).astype(jnp.bfloat16)

    # ---- fused last hop + feat_trans + aggregation --------------------------
    grid = (n_pad // tm, n_pad // tk)
    in_specs = (
        [pl.BlockSpec((tm, tk), lambda i, k: (i, k)),            # adj tile (stream)
         pl.BlockSpec((tm, 1), lambda i, k: (i, 0))]             # dnorm rows
        + [pl.BlockSpec((tm, in_p), lambda i, k: (i, 0))         # h_idx row blocks
           for _ in range(order)]
        + [pl.BlockSpec((tk, out_p), lambda i, k: (k, 0))]       # HW k-stream
        + [pl.BlockSpec((in_p, out_p), lambda i, k: (0, 0))      # W_k resident
           for _ in range(order)]
        + [pl.BlockSpec((1, out_p), lambda i, k: (0, 0))         # b_k resident
           for _ in range(order + 1)]
    )

    out_pad = pl.pallas_call(
        _make_fused_kernel(order, out_p, aggr),
        out_shape=jax.ShapeDtypeStruct((n_pad, n_out_p), jnp.float32),
        grid_spec=pltpu.PrefetchScalarGridSpec(
            num_scalar_prefetch=0,
            grid=grid,
            in_specs=in_specs,
            out_specs=pl.BlockSpec((tm, n_out_p), lambda i, k: (i, 0)),
            scratch_shapes=[pltpu.VMEM((tm, out_p), jnp.float32)],
        ),
        compiler_params=pltpu.CompilerParams(
            dimension_semantics=("parallel", "arbitrary"),
            vmem_limit_bytes=vmem_limit,
        ),
    )(adj_p, dn_p, *hops, hw, *w_bf[:order], *b_f32)

    # ---- strip padding ------------------------------------------------------
    if aggr == "concat":
        parts = [out_pad[:n, idx * out_p: idx * out_p + out_dim]
                 for idx in range(order + 1)]
        return jnp.concatenate(parts, axis=1)
    return out_pad[:n, :out_dim]


# --------------------------------------------------------------------------
# Pure-JAX reference (float32, mirrors the PyTorch forward, default config)
# --------------------------------------------------------------------------
def gcn_layer_reference(adj, dnorm, x, weights, biases, *, order=1,
                        aggr="concat"):
    dn = jnp.asarray(dnorm, jnp.float32).reshape(-1, 1)
    h_hop = [x]
    for _ in range(order):
        h_hop.append((adj @ h_hop[-1]) * dn)
    parts = [h_hop[i] @ weights[i] + jnp.asarray(biases[i]).reshape(1, -1)
             for i in range(order + 1)]
    if aggr == "concat":
        return jnp.concatenate(parts, axis=1)
    out = parts[0]
    for p in parts[1:]:
        out = out + p
    return out


if __name__ == "__main__":
    key = jax.random.PRNGKey(0)
    k_adj, k_x, k_w, k_b = jax.random.split(key, 4)

    # Deliberately non-multiple-of-128 sizes to exercise padding + the grid.
    N, in_dim, out_dim = 300, 96, 64

    # Synthetic graph: binary adjacency (unit edge weights), D_norm = 1/in-deg.
    adj = (jax.random.uniform(k_adj, (N, N)) < 0.25).astype(jnp.float32)
    deg = jnp.maximum(adj.sum(axis=1, keepdims=True), 1.0)
    dnorm = (1.0 / deg).astype(jnp.float32)             # [N, 1]
    x = jax.random.normal(k_x, (N, in_dim), dtype=jnp.float32)

    # Adjacency is static per GraphSAINT subgraph: pad + cast ONCE and reuse
    # it for every layer / forward (bf16 is exact for these 0/1 edge weights).
    adj_prepared = prepare_adjacency(adj)

    std = (2.0 / (in_dim + out_dim)) ** 0.5

    def make_params(order, seed):
        kw = jax.random.split(jax.random.fold_in(k_w, seed), order + 1)
        kb = jax.random.split(jax.random.fold_in(k_b, seed), order + 1)
        ws = [(jax.random.normal(a, (in_dim, out_dim)) * std).astype(jnp.float32)
              for a in kw]
        bs = [(jax.random.normal(a, (out_dim,)) * 0.1).astype(jnp.float32)
              for a in kb]
        return ws, bs

    # Default config (order=1, concat) plus an order=2 / 'mean' check that
    # exercises the propagate kernel.
    for order, aggr in [(1, "concat"), (2, "mean")]:
        weights, biases = make_params(order, order)
        out = gcn_layer_forward(adj_prepared, dnorm, x, weights, biases,
                                order=order, aggr=aggr)
        out = jax.block_until_ready(out)
        ref = gcn_layer_reference(adj, dnorm, x, weights, biases,
                                  order=order, aggr=aggr)
        n_out = (order + 1) * out_dim if aggr == "concat" else out_dim
        assert out.shape == (N, n_out), (out.shape, (N, n_out))
        assert jnp.allclose(out, ref, atol=2e-2, rtol=2e-2), \
            float(jnp.max(jnp.abs(out - ref)))

    print("KERNEL_OK")
</pallas_src>

<mosaic_0001>
module attributes {stable_mosaic.version = 11 : i64} {
  func.func @kernel(%arg0: i32, %arg1: i32, %arg2: memref<128x384xbf16, #tpu.memory_space<vmem>>, %arg3: memref<128x1xf32, #tpu.memory_space<vmem>>, %arg4: memref<128x128xbf16, #tpu.memory_space<vmem>>, %arg5: memref<384x128xbf16, #tpu.memory_space<vmem>>, %arg6: memref<128x128xbf16, #tpu.memory_space<vmem>>, %arg7: memref<1x128xf32, #tpu.memory_space<vmem>>, %arg8: memref<1x128xf32, #tpu.memory_space<vmem>>, %arg9: memref<128x256xf32, #tpu.memory_space<vmem>>, %arg10: memref<128x128xf32, #tpu.memory_space<vmem>>) attributes {dimension_semantics = [#tpu.dimension_semantics<parallel>, #tpu.dimension_semantics<arbitrary>], iteration_bounds = array<i64: 3, 1>, scalar_prefetch = 0 : i64, scratch_operands = 1 : i64, tpu.core_type = #tpu.core_type<tc>, window_params = [{transform_indices = @transform_0, window_bounds = array<i64: 128, 384>}, {transform_indices = @transform_1, window_bounds = array<i64: 128, 1>}, {transform_indices = @transform_2, window_bounds = array<i64: 128, 128>}, {transform_indices = @transform_3, window_bounds = array<i64: 384, 128>}, {pipeline_mode = #tpu.pipeline_mode<synchronous>, transform_indices = @transform_4, window_bounds = array<i64: 128, 128>}, {pipeline_mode = #tpu.pipeline_mode<synchronous>, transform_indices = @transform_5, window_bounds = array<i64: 1, 128>}, {pipeline_mode = #tpu.pipeline_mode<synchronous>, transform_indices = @transform_6, window_bounds = array<i64: 1, 128>}, {transform_indices = @transform_7, window_bounds = array<i64: 128, 256>}]} {
    %c0_i32 = arith.constant 0 : i32
    %0 = arith.cmpi eq, %arg1, %c0_i32 : i32
    %1 = arith.extui %0 : i1 to i32
    %c0_i32_0 = arith.constant 0 : i32
    %2 = arith.cmpi ne, %1, %c0_i32_0 : i32
    scf.if %2 {
      %cst_10 = arith.constant 0.000000e+00 : f32
      %12 = vector.broadcast %cst_10 : f32 to vector<128x128xf32>
      %c0_11 = arith.constant 0 : index
      %c0_12 = arith.constant 0 : index
      %13 = vector.load %arg10[%c0_11, %c0_12] : memref<128x128xf32, #tpu.memory_space<vmem>>, vector<128x128xf32>
      tpu.vector_store %arg10[%c0_11, %c0_12], %12 {strides = array<i32>} : memref<128x128xf32, #tpu.memory_space<vmem>>, vector<128x128xf32>,
    } else {
    }
    %c0 = arith.constant 0 : index
    %c0_1 = arith.constant 0 : index
    %3 = vector.load %arg2[%c0, %c0_1] : memref<128x384xbf16, #tpu.memory_space<vmem>>, vector<128x384xbf16>
    %c0_2 = arith.constant 0 : index
    %c0_3 = arith.constant 0 : index
    %4 = vector.load %arg5[%c0_2, %c0_3] : memref<384x128xbf16, #tpu.memory_space<vmem>>, vector<384x128xbf16>
    %c0_4 = arith.constant 0 : index
    %c0_5 = arith.constant 0 : index
    %5 = vector.load %arg10[%c0_4, %c0_5] : memref<128x128xf32, #tpu.memory_space<vmem>>, vector<128x128xf32>
    %cst = arith.constant dense<0.000000e+00> : vector<128x128xf32>
    %6 = tpu.matmul %3, %4, %cst {dimension_numbers = #tpu.dot_dimension_numbers<[1], [0], [0], [1], [0, 0, 1, 1], [], []>} : vector<128x384xbf16>, vector<384x128xbf16>, vector<128x128xf32> -> vector<128x128xf32>
    %7 = arith.addf %5, %6 : vector<128x128xf32>
    %c0_6 = arith.constant 0 : index
    %c0_7 = arith.constant 0 : index
    %8 = vector.load %arg10[%c0_6, %c0_7] : memref<128x128xf32, #tpu.memory_space<vmem>>, vector<128x128xf32>
    tpu.vector_store %arg10[%c0_6, %c0_7], %7 {strides = array<i32>} : memref<128x128xf32, #tpu.memory_space<vmem>>, vector<128x128xf32>,
    %c0_i32_8 = arith.constant 0 : i32
    %9 = arith.cmpi eq, %arg1, %c0_i32_8 : i32
    %10 = arith.extui %9 : i1 to i32
    %c0_i32_9 = arith.constant 0 : i32
    %11 = arith.cmpi ne, %10, %c0_i32_9 : i32
    scf.if %11 {
      %c0_10 = arith.constant 0 : index
      %c0_11 = arith.constant 0 : index
      %12 = vector.load %arg10[%c0_10, %c0_11] : memref<128x128xf32, #tpu.memory_space<vmem>>, vector<128x128xf32>
      %c0_12 = arith.constant 0 : index
      %c0_13 = arith.constant 0 : index
      %13 = vector.load %arg3[%c0_12, %c0_13] : memref<128x1xf32, #tpu.memory_space<vmem>>, vector<128x1xf32>
      %14 = vector.broadcast %13 : vector<128x1xf32> to vector<128x128xf32>
      %15 = arith.mulf %12, %14 : vector<128x128xf32>
      %c0_14 = arith.constant 0 : index
      %c0_15 = arith.constant 0 : index
      %16 = vector.load %arg8[%c0_14, %c0_15] : memref<1x128xf32, #tpu.memory_space<vmem>>, vector<1x128xf32>
      %17 = vector.broadcast %16 : vector<1x128xf32> to vector<128x128xf32>
      %18 = arith.addf %15, %17 : vector<128x128xf32>
      %c0_16 = arith.constant 0 : index
      %c0_17 = arith.constant 0 : index
      %19 = vector.load %arg4[%c0_16, %c0_17] : memref<128x128xbf16, #tpu.memory_space<vmem>>, vector<128x128xbf16>
      %c0_18 = arith.constant 0 : index
      %c0_19 = arith.constant 0 : index
      %20 = vector.load %arg6[%c0_18, %c0_19] : memref<128x128xbf16, #tpu.memory_space<vmem>>, vector<128x128xbf16>
      %cst_20 = arith.constant dense<0.000000e+00> : vector<128x128xf32>
      %21 = tpu.matmul %19, %20, %cst_20 {dimension_numbers = #tpu.dot_dimension_numbers<[1], [0], [0], [1], [0, 0, 1, 1], [], []>} : vector<128x128xbf16>, vector<128x128xbf16>, vector<128x128xf32> -> vector<128x128xf32>
      %c0_21 = arith.constant 0 : index
      %c0_22 = arith.constant 0 : index
      %22 = vector.load %arg7[%c0_21, %c0_22] : memref<1x128xf32, #tpu.memory_space<vmem>>, vector<1x128xf32>
      %23 = vector.broadcast %22 : vector<1x128xf32> to vector<128x128xf32>
      %24 = arith.addf %21, %23 : vector<128x128xf32>
      %c0_23 = arith.constant 0 : index
      %c0_24 = arith.constant 0 : index
      %25 = vector.load %arg9[%c0_23, %c0_24] : memref<128x256xf32, #tpu.memory_space<vmem>>, vector<128x128xf32>
      tpu.vector_store %arg9[%c0_23, %c0_24], %24 {strides = array<i32>} : memref<128x256xf32, #tpu.memory_space<vmem>>, vector<128x128xf32>,
      %c0_25 = arith.constant 0 : index
      %c128 = arith.constant 128 : index
      %26 = vector.load %arg9[%c0_25, %c128] : memref<128x256xf32, #tpu.memory_space<vmem>>, vector<128x128xf32>
      tpu.vector_store %arg9[%c0_25, %c128], %18 {strides = array<i32>} : memref<128x256xf32, #tpu.memory_space<vmem>>, vector<128x128xf32>,
    } else {
    }
    return
  }
  func.func @transform_0(%arg0: i32, %arg1: i32) -> (i32, i32) {
    %c0_i32 = arith.constant 0 : i32
    return %arg0, %arg1 : i32, i32
  }
  func.func @transform_1(%arg0: i32, %arg1: i32) -> (i32, i32) {
    %c0_i32 = arith.constant 0 : i32
    %c0_i32_0 = arith.constant 0 : i32
    return %arg0, %c0_i32 : i32, i32
  }
  func.func @transform_2(%arg0: i32, %arg1: i32) -> (i32, i32) {
    %c0_i32 = arith.constant 0 : i32
    %c0_i32_0 = arith.constant 0 : i32
    return %arg0, %c0_i32 : i32, i32
  }
  func.func @transform_3(%arg0: i32, %arg1: i32) -> (i32, i32) {
    %c0_i32 = arith.constant 0 : i32
    %c0_i32_0 = arith.constant 0 : i32
    return %arg1, %c0_i32 : i32, i32
  }
  func.func @transform_4(%arg0: i32, %arg1: i32) -> (i32, i32) {
    %c0_i32 = arith.constant 0 : i32
    %c0_i32_0 = arith.constant 0 : i32
    %c0_i32_1 = arith.constant 0 : i32
    return %c0_i32, %c0_i32_0 : i32, i32
  }
  func.func @transform_5(%arg0: i32, %arg1: i32) -> (i32, i32) {
    %c0_i32 = arith.constant 0 : i32
    %c0_i32_0 = arith.constant 0 : i32
    %c0_i32_1 = arith.constant 0 : i32
    return %c0_i32, %c0_i32_0 : i32, i32
  }
  func.func @transform_6(%arg0: i32, %arg1: i32) -> (i32, i32) {
    %c0_i32 = arith.constant 0 : i32
    %c0_i32_0 = arith.constant 0 : i32
    %c0_i32_1 = arith.constant 0 : i32
    return %c0_i32, %c0_i32_0 : i32, i32
  }
  func.func @transform_7(%arg0: i32, %arg1: i32) -> (i32, i32) {
    %c0_i32 = arith.constant 0 : i32
    %c0_i32_0 = arith.constant 0 : i32
    return %arg0, %c0_i32 : i32, i32
  }
}

</mosaic_0001>

<llo_original>
// kernel: tpu_custom_call.1
$region0: #{tpu_custom_call.1}
  #allocation0 [shape = 'u32[]', space=smem, size = 0x4, offset = 0x4, fixed_abs, tag = 'smem constant byte address 0x4 - core index']
  #allocation1 [shape = 'u32[144,128]{1,0:T(1,128)}', space=vmem, size = 0x12000, scoped, tag = 'internal scratch']
  #allocation2 [shape = 'f32[128,128]{1,0:T(8,128)}', space=vmem, size = 0x10000, scoped, tag = 'scratch operand']
  %s0 = inlined_call_operand.hbm [shape: bf16[384,384], index: 0, kind: input, shape index: {}]
  %s1 = inlined_call_operand.vmem [shape: f32[384,1], index: 1, kind: input, shape index: {}]
  %s2 = inlined_call_operand.vmem [shape: bf16[384,128], index: 2, kind: input, shape index: {}]
  %s3 = inlined_call_operand.vmem [shape: bf16[384,128], index: 3, kind: input, shape index: {}]
  %s4 = inlined_call_operand.hbm [shape: bf16[128,128], index: 4, kind: input, shape index: {}]
  %s5 = inlined_call_operand.vmem [shape: f32[1,128], index: 5, kind: input, shape index: {}]
  %s6 = inlined_call_operand.vmem [shape: f32[1,128], index: 6, kind: input, shape index: {}]
  %s7 = inlined_call_operand.hbm [shape: f32[384,256], index: 7, kind: output, shape index: {}]
  %s8 = sld [smem:[#allocation0]]
  $region77: #{tpu_custom_call.1} parent=0
    _
  %s10 = ssub.s32 1, %s8
  %s11 = scalar_select 0, %s10, %s8
  $region1: #{tpu_custom_call.1} parent=0
    #allocation3 [shape = 'u8[196608]{0}', space=vmem, size = 0x30000, scoped, tag = 'input window, operand 0']
    #allocation4 [shape = 's32[2]{0}', space=sflag, size = 0x8, scoped, tag = 'scoped memory for tpu_custom_call.1']
    #allocation5 [shape = 's32[2]{0}', space=sflag, size = 0x8, scoped, tag = 'scoped memory for tpu_custom_call.1']
    #allocation6 [shape = 'u8[32768]{0}', space=vmem, size = 0x8000, scoped, tag = 'input window, operand 4, single buffered']
    #allocation7 [shape = 's32[1]{0}', space=sflag, size = 0x4, scoped, tag = 'scoped memory for tpu_custom_call.1']
    #allocation8 [shape = 'u8[262144]{0}', space=vmem, size = 0x40000, scoped, tag = 'output window, operand 0']
    %12 = vsyncpa [#allocation4], 0
    %s13 = scalar_lea.sflag [#allocation4], 1
    %14 = vsyncpa %s13, 0
    %15 = vsyncpa [#allocation7], 0
    %16 = vsyncpa [#allocation5], 0
    %s17 = scalar_lea.sflag [#allocation5], 1
    %18 = vsyncpa %s17, 0
    loop: start=0, step=1, limit=5
    $region2: #{tpu_custom_call.1} parent=1 // loop_pre_header
      _
    $region3: #{tpu_custom_call.1} parent=1 // loop_header
      %s20 = sphi 0, %s24
      %p21 = scmp.ge.s32.totalorder %s20, 5
      %s27 = sphi 0, %s39
      %s28 = sphi 0, %s35
      %s29 = sphi 0, %s27
      %s30 = sphi 0, %s28
      %s31 = sphi 0, %s29
      %s32 = sphi 0, %s30
      %s44 = sphi 0, %s46
      %s47 = sphi 0, %s44
      %s48 = sphi 0, %s47
      %s64 = sphi 0, %s48
      %s70 = sphi 0, %s72
      %s73 = sphi 0, %s70
      %s74 = sphi 0, %s73
      %s90 = sphi 0, %s74
      %s96 = sphi 0, %s98
      %s99 = sphi 0, %s96
      %s100 = sphi 0, %s99
      %s116 = sphi 0, %s100
      %s122 = sphi 0, %s124
      %s125 = sphi 0, %s122
      %s126 = sphi 0, %s125
      %s142 = sphi 0, %s126
      %s146 = sphi 0, %s146
      %s148 = sphi 0, %s146
      %s149 = sphi 0, %s148
      %s163 = sphi 0, %s149
      %s167 = sphi 0, %s167
      %s169 = sphi 0, %s167
      %s170 = sphi 0, %s169
      %s184 = sphi 0, %s170
      %s188 = sphi 0, %s188
      %s190 = sphi 0, %s188
      %s191 = sphi 0, %s190
      %s205 = sphi 0, %s191
      %s211 = sphi 0, %s213
      %s214 = sphi 0, %s211
      %s215 = sphi 0, %s214
      %s231 = sphi 0, %s215
    $region4: #{tpu_custom_call.1} parent=1 // loop_header_branch
      %23 = sbr.rel (%p21) target = $region8
    $region5: #{tpu_custom_call.1} parent=1 // loop_body
      %s25 = ssub.s32 %s20, 1
      %s26 = ssub.s32 %s20, 2
      %s33 = sadd.s32 1, %s28
      %p34 = scmp.ge.s32.totalorder %s33, 1
      %s35 = scalar_select %p34, 0, %s33
      %s36 = sadd.s32 1, %s27
      %s37 = scalar_select %p34, %s36, %s27
      %p38 = scmp.ge.s32.totalorder %s37, 3
      %s39 = scalar_select %p38, 0, %s37
      %s40 = ssub.s32 %s27, %s39
      %s41 = ssub.s32 %s28, %s35
      %s42 = sor.u32 %s40, %s41
      %p43 = scmp.eq.s32.totalorder %s42, 0
      %s45 = sadd.s32 %s44, 1
      %s46 = scalar_select %p43, %s44, %s45
      %p49 = pneg %p43
      %p50 = scmp.eq.s32.totalorder %s20, 2
      %p51 = por %p49, %p50
      %p52 = scmp.ne.s32.totalorder %s44, %s47
      %p53 = scmp.eq.s32.totalorder %s20, 0
      %p54 = por %p52, %p53
      %p55 = scmp.ne.s32.totalorder %s44, %s47
      %p56 = scmp.eq.s32.totalorder %s25, 2
      %p57 = por %p55, %p56
      %p58 = scmp.ne.s32.totalorder %s47, %s48
      %p59 = scmp.eq.s32.totalorder %s25, 0
      %p60 = por %p58, %p59
      %p61 = scmp.ne.s32.totalorder %s47, %s48
      %p62 = scmp.eq.s32.totalorder %s26, 2
      %p63 = por %p61, %p62
      %p65 = scmp.ne.s32.totalorder %s48, %s64
      %p66 = scmp.eq.s32.totalorder %s26, 0
      %p67 = por %p65, %p66
      %s68 = ssub.s32 %s27, %s39
      %p69 = scmp.eq.s32.totalorder %s68, 0
      %s71 = sadd.s32 %s70, 1
      %s72 = scalar_select %p69, %s70, %s71
      %p75 = pneg %p69
      %p76 = scmp.eq.s32.totalorder %s20, 2
      %p77 = por %p75, %p76
      %p78 = scmp.ne.s32.totalorder %s70, %s73
      %p79 = scmp.eq.s32.totalorder %s20, 0
      %p80 = por %p78, %p79
      %p81 = scmp.ne.s32.totalorder %s70, %s73
      %p82 = scmp.eq.s32.totalorder %s25, 2
      %p83 = por %p81, %p82
      %p84 = scmp.ne.s32.totalorder %s73, %s74
      %p85 = scmp.eq.s32.totalorder %s25, 0
      %p86 = por %p84, %p85
      %p87 = scmp.ne.s32.totalorder %s73, %s74
      %p88 = scmp.eq.s32.totalorder %s26, 2
      %p89 = por %p87, %p88
      %p91 = scmp.ne.s32.totalorder %s74, %s90
      %p92 = scmp.eq.s32.totalorder %s26, 0
      %p93 = por %p91, %p92
      %s94 = ssub.s32 %s27, %s39
      %p95 = scmp.eq.s32.totalorder %s94, 0
      %s97 = sadd.s32 %s96, 1
      %s98 = scalar_select %p95, %s96, %s97
      %p101 = pneg %p95
      %p102 = scmp.eq.s32.totalorder %s20, 2
      %p103 = por %p101, %p102
      %p104 = scmp.ne.s32.totalorder %s96, %s99
      %p105 = scmp.eq.s32.totalorder %s20, 0
      %p106 = por %p104, %p105
      %p107 = scmp.ne.s32.totalorder %s96, %s99
      %p108 = scmp.eq.s32.totalorder %s25, 2
      %p109 = por %p107, %p108
      %p110 = scmp.ne.s32.totalorder %s99, %s100
      %p111 = scmp.eq.s32.totalorder %s25, 0
      %p112 = por %p110, %p111
      %p113 = scmp.ne.s32.totalorder %s99, %s100
      %p114 = scmp.eq.s32.totalorder %s26, 2
      %p115 = por %p113, %p114
      %p117 = scmp.ne.s32.totalorder %s100, %s116
      %p118 = scmp.eq.s32.totalorder %s26, 0
      %p119 = por %p117, %p118
      %s120 = ssub.s32 %s28, %s35
      %p121 = scmp.eq.s32.totalorder %s120, 0
      %s123 = sadd.s32 %s122, 1
      %s124 = scalar_select %p121, %s122, %s123
      %p127 = pneg %p121
      %p128 = scmp.eq.s32.totalorder %s20, 2
      %p129 = por %p127, %p128
      %p130 = scmp.ne.s32.totalorder %s122, %s125
      %p131 = scmp.eq.s32.totalorder %s20, 0
      %p132 = por %p130, %p131
      %p133 = scmp.ne.s32.totalorder %s122, %s125
      %p134 = scmp.eq.s32.totalorder %s25, 2
      %p135 = por %p133, %p134
      %p136 = scmp.ne.s32.totalorder %s125, %s126
      %p137 = scmp.eq.s32.totalorder %s25, 0
      %p138 = por %p136, %p137
      %p139 = scmp.ne.s32.totalorder %s125, %s126
      %p140 = scmp.eq.s32.totalorder %s26, 2
      %p141 = por %p139, %p140
      %p143 = scmp.ne.s32.totalorder %s126, %s142
      %p144 = scmp.eq.s32.totalorder %s26, 0
      %p145 = por %p143, %p144
      %s147 = sadd.s32 %s146, 1
      %p150 = scmp.eq.s32.totalorder %s20, 2
      %p151 = scmp.ne.s32.totalorder %s146, %s148
      %p152 = scmp.eq.s32.totalorder %s20, 0
      %p153 = por %p151, %p152
      %p154 = scmp.ne.s32.totalorder %s146, %s148
      %p155 = scmp.eq.s32.totalorder %s25, 2
      %p156 = por %p154, %p155
      %p157 = scmp.ne.s32.totalorder %s148, %s149
      %p158 = scmp.eq.s32.totalorder %s25, 0
      %p159 = por %p157, %p158
      %p160 = scmp.ne.s32.totalorder %s148, %s149
      %p161 = scmp.eq.s32.totalorder %s26, 2
      %p162 = por %p160, %p161
      %p164 = scmp.ne.s32.totalorder %s149, %s163
      %p165 = scmp.eq.s32.totalorder %s26, 0
      %p166 = por %p164, %p165
      %s168 = sadd.s32 %s167, 1
      %p171 = scmp.eq.s32.totalorder %s20, 2
      %p172 = scmp.ne.s32.totalorder %s167, %s169
      %p173 = scmp.eq.s32.totalorder %s20, 0
      %p174 = por %p172, %p173
      %p175 = scmp.ne.s32.totalorder %s167, %s169
      %p176 = scmp.eq.s32.totalorder %s25, 2
      %p177 = por %p175, %p176
      %p178 = scmp.ne.s32.totalorder %s169, %s170
      %p179 = scmp.eq.s32.totalorder %s25, 0
      %p180 = por %p178, %p179
      %p181 = scmp.ne.s32.totalorder %s169, %s170
      %p182 = scmp.eq.s32.totalorder %s26, 2
      %p183 = por %p181, %p182
      %p185 = scmp.ne.s32.totalorder %s170, %s184
      %p186 = scmp.eq.s32.totalorder %s26, 0
      %p187 = por %p185, %p186
      %s189 = sadd.s32 %s188, 1
      %p192 = scmp.eq.s32.totalorder %s20, 2
      %p193 = scmp.ne.s32.totalorder %s188, %s190
      %p194 = scmp.eq.s32.totalorder %s20, 0
      %p195 = por %p193, %p194
      %p196 = scmp.ne.s32.totalorder %s188, %s190
      %p197 = scmp.eq.s32.totalorder %s25, 2
      %p198 = por %p196, %p197
      %p199 = scmp.ne.s32.totalorder %s190, %s191
      %p200 = scmp.eq.s32.totalorder %s25, 0
      %p201 = por %p199, %p200
      %p202 = scmp.ne.s32.totalorder %s190, %s191
      %p203 = scmp.eq.s32.totalorder %s26, 2
      %p204 = por %p202, %p203
      %p206 = scmp.ne.s32.totalorder %s191, %s205
      %p207 = scmp.eq.s32.totalorder %s26, 0
      %p208 = por %p206, %p207
      %s209 = ssub.s32 %s27, %s39
      %p210 = scmp.eq.s32.totalorder %s209, 0
      %s212 = sadd.s32 %s211, 1
      %s213 = scalar_select %p210, %s211, %s212
      %p216 = pneg %p210
      %p217 = scmp.eq.s32.totalorder %s20, 2
      %p218 = por %p216, %p217
      %p219 = scmp.ne.s32.totalorder %s211, %s214
      %p220 = scmp.eq.s32.totalorder %s20, 0
      %p221 = por %p219, %p220
      %p222 = scmp.ne.s32.totalorder %s211, %s214
      %p223 = scmp.eq.s32.totalorder %s25, 2
      %p224 = por %p222, %p223
      %p225 = scmp.ne.s32.totalorder %s214, %s215
      %p226 = scmp.eq.s32.totalorder %s25, 0
      %p227 = por %p225, %p226
      %p228 = scmp.ne.s32.totalorder %s214, %s215
      %p229 = scmp.eq.s32.totalorder %s26, 2
      %p230 = por %p228, %p229
      %p232 = scmp.ne.s32.totalorder %s215, %s231
      %p233 = scmp.eq.s32.totalorder %s26, 0
      %p234 = por %p232, %p233
      %p235 = scmp.le.s32.totalorder 1, %s20
      %p236 = scmp.lt.s32.totalorder %s20, 4
      %p237 = pnand %p235, %p236
      %p238 = pneg %p237
      // Predicated region
      $region9: #{tpu_custom_call.1} parent=5 // pred_check
        _
      $region10: #{tpu_custom_call.1} parent=5 // pred_check_branch
        %240 = sbr.rel (%p237) target = $region12
      $region11: #{tpu_custom_call.1} parent=5 // pred_region
        %s241 = ssub.s32 %s20, 1
        // Predicated region
        $region13: #{tpu_custom_call.1} parent=11 // pred_check
          %p242 = pneg %p138
        $region14: #{tpu_custom_call.1} parent=11 // pred_check_branch
          %244 = sbr.rel (%p242) target = $region16
        $region15: #{tpu_custom_call.1} parent=11 // pred_region
          %s245 = smul.u32 48, %s30
          %p246 = scmp.lt.s32.totalorder %s245, 47
          %s247 = scalar_select %p246, %s245, 47
          %s248 = smul.addr %s247, 4
          %s249 = scalar_lea.vmem %s3, %s248
          %s250 = smul.u32 48, %s30
        $region16: #{tpu_custom_call.1} parent=11 // pred_fallthru
          _
        // Predicated region
        $region17: #{tpu_custom_call.1} parent=11 // pred_check
          %p251 = pneg %p159
        $region18: #{tpu_custom_call.1} parent=11 // pred_check_branch
          %253 = sbr.rel (%p251) target = $region20
        $region19: #{tpu_custom_call.1} parent=11 // pred_region
          %s255 = ssub.s32 1024, 1024
          %256 = vsyncadd [#allocation7], %s255
          %s257 = sshll.u32 [#allocation6], 4
          %s258 = int_to_ptr.vmem [resolvable:$true] %s257
          %263 = dma.hbm_to_vmem [thread:$0]  %s4, 1024, %s258, [#allocation7], 64, 64, 4
        $region20: #{tpu_custom_call.1} parent=11 // pred_fallthru
          _
        // Predicated region
        $region21: #{tpu_custom_call.1} parent=11 // pred_check
          %p264 = pneg %p180
        $region22: #{tpu_custom_call.1} parent=11 // pred_check_branch
          %266 = sbr.rel (%p264) target = $region24
        $region23: #{tpu_custom_call.1} parent=11 // pred_region
          _
        $region24: #{tpu_custom_call.1} parent=11 // pred_fallthru
          _
        // Predicated region
        $region25: #{tpu_custom_call.1} parent=11 // pred_check
          %p267 = pneg %p201
        $region26: #{tpu_custom_call.1} parent=11 // pred_check_branch
          %269 = sbr.rel (%p267) target = $region28
        $region27: #{tpu_custom_call.1} parent=11 // pred_region
          _
        $region28: #{tpu_custom_call.1} parent=11 // pred_fallthru
          _
      $region12: #{tpu_custom_call.1} parent=5 // pred_fallthru
        _
      %p270 = scmp.lt.s32.totalorder %s20, 3
      // Predicated region
      $region29: #{tpu_custom_call.1} parent=5 // pred_check
        %p271 = pneg %p270
      $region30: #{tpu_custom_call.1} parent=5 // pred_check_branch
        %273 = sbr.rel (%p271) target = $region32
      $region31: #{tpu_custom_call.1} parent=5 // pred_region
        // Predicated region
        $region33: #{tpu_custom_call.1} parent=31 // pred_check
          %p274 = pneg %p54
        $region34: #{tpu_custom_call.1} parent=31 // pred_check_branch
          %276 = sbr.rel (%p274) target = $region36
        $region35: #{tpu_custom_call.1} parent=31 // pred_region
          %s277 = sand.u32 %s44, 1
          %s278 = scalar_lea.sflag [#allocation4], %s277
          %s279 = sand.u32 %s44, 1
          %s280 = smul.addr %s279, 192
          %s281 = scalar_lea.vmem [#allocation3], %s280
          %s282 = smul.u32 16, %s27
          %s283 = smul.u32 3, %s28
          %s285 = ssub.s32 3072, 3072
          %286 = vsyncadd %s278, %s285
          %s287 = smul.addr %s282, 3
          %s288 = sadd.s32 %s283, %s287
          %s289 = smul.addr %s288, 64
          %s290 = scalar_lea.hbm %s0, %s289
          %s291 = sshll.u32 %s281, 4
          %s292 = int_to_ptr.vmem [resolvable:$true] %s291
          %297 = dma.hbm_to_vmem [thread:$0]  %s290, 3072, %s292, %s278, 192, 192, 12
        $region36: #{tpu_custom_call.1} parent=31 // pred_fallthru
          _
        // Predicated region
        $region37: #{tpu_custom_call.1} parent=31 // pred_check
          %p298 = pneg %p80
        $region38: #{tpu_custom_call.1} parent=31 // pred_check_branch
          %300 = sbr.rel (%p298) target = $region40
        $region39: #{tpu_custom_call.1} parent=31 // pred_region
          %s301 = smul.u32 16, %s27
          %p302 = scmp.lt.s32.totalorder %s301, 47
          %s303 = scalar_select %p302, %s301, 47
          %s304 = smul.addr %s303, 8
          %s305 = scalar_lea.vmem %s1, %s304
          %s306 = smul.u32 16, %s27
        $region40: #{tpu_custom_call.1} parent=31 // pred_fallthru
          _
        // Predicated region
        $region41: #{tpu_custom_call.1} parent=31 // pred_check
          %p307 = pneg %p106
        $region42: #{tpu_custom_call.1} parent=31 // pred_check_branch
          %309 = sbr.rel (%p307) target = $region44
        $region43: #{tpu_custom_call.1} parent=31 // pred_region
          %s310 = smul.u32 16, %s27
          %p311 = scmp.lt.s32.totalorder %s310, 47
          %s312 = scalar_select %p311, %s310, 47
          %s313 = smul.addr %s312, 4
          %s314 = scalar_lea.vmem %s2, %s313
          %s315 = smul.u32 16, %s27
        $region44: #{tpu_custom_call.1} parent=31 // pred_fallthru
          _
      $region32: #{tpu_custom_call.1} parent=5 // pred_fallthru
        _
      %p316 = scmp.le.s32.totalorder 1, %s20
      %p317 = scmp.lt.s32.totalorder %s20, 4
      %p318 = pnand %p316, %p317
      %p319 = pneg %p318
      // Predicated region
      $region45: #{tpu_custom_call.1} parent=5 // pred_check
        _
      $region46: #{tpu_custom_call.1} parent=5 // pred_check_branch
        %321 = sbr.rel (%p318) target = $region48
      $region47: #{tpu_custom_call.1} parent=5 // pred_region
        %s322 = ssub.s32 %s20, 1
        %s323 = sand.u32 %s47, 1
        %s324 = scalar_lea.sflag [#allocation4], %s323
        %s325 = sand.u32 %s47, 1
        %s326 = smul.addr %s325, 192
        %s327 = scalar_lea.vmem [#allocation3], %s326
        // Predicated region
        $region49: #{tpu_custom_call.1} parent=47 // pred_check
          %p328 = pneg %p60
        $region50: #{tpu_custom_call.1} parent=47 // pred_check_branch
          %330 = sbr.rel (%p328) target = $region52
        $region51: #{tpu_custom_call.1} parent=47 // pred_region
          %331 = dma.done %s324, 3072
        $region52: #{tpu_custom_call.1} parent=47 // pred_fallthru
          _
        // Predicated region
        $region53: #{tpu_custom_call.1} parent=47 // pred_check
          %p332 = pneg %p159
        $region54: #{tpu_custom_call.1} parent=47 // pred_check_branch
          %334 = sbr.rel (%p332) target = $region56
        $region55: #{tpu_custom_call.1} parent=47 // pred_region
          %335 = dma.done [#allocation7], 1024
        $region56: #{tpu_custom_call.1} parent=47 // pred_fallthru
          _
        %s336 = sand.u32 %s47, 1
        %s337 = scalar_lea.sflag [#allocation4], %s336
        %s338 = sand.u32 %s47, 1
        %s339 = smul.addr %s338, 192
        %s340 = scalar_lea.vmem [#allocation3], %s339
        %p341 = pneg %p60
        %p342 = pneg %p57
        %s343 = smul.u32 16, %s29
        %p344 = scmp.lt.s32.totalorder %s343, 47
        %s345 = scalar_select %p344, %s343, 47
        %s346 = smul.addr %s345, 8
        %s347 = scalar_lea.vmem %s1, %s346
        %p348 = pneg %p86
        %p349 = pneg %p83
        %s350 = smul.u32 16, %s29
        %p351 = scmp.lt.s32.totalorder %s350, 47
        %s352 = scalar_select %p351, %s350, 47
        %s353 = smul.addr %s352, 4
        %s354 = scalar_lea.vmem %s2, %s353
        %p355 = pneg %p112
        %p356 = pneg %p109
        %s357 = smul.u32 48, %s30
        %p358 = scmp.lt.s32.totalorder %s357, 47
        %s359 = scalar_select %p358, %s357, 47
        %s360 = smul.addr %s359, 4
        %s361 = scalar_lea.vmem %s3, %s360
        %p362 = pneg %p138
        %p363 = pneg %p135
        %p364 = pneg %p159
        %p365 = pneg %p156
        %p366 = pneg %p180
        %p367 = pneg %p177
        %p368 = pneg %p201
        %p369 = pneg %p198
        %p370 = pneg %p227
        %p371 = pneg %p224
        %s372 = sand.u32 %s214, 1
        %s373 = scalar_lea.sflag [#allocation5], %s372
        %s374 = sand.u32 %s214, 1
        %s375 = smul.addr %s374, 256
        %s376 = scalar_lea.vmem [#allocation8], %s375
        %s377 = smul.u32 16, %s29
        %s378 = smul.u32 3, %s30
        %s379 = smul.u32 16, %s29
        %p380 = scmp.lt.s32.totalorder %s379, 47
        %s381 = scalar_select %p380, %s379, 47
        %s382 = smul.addr %s381, 8
        %s383 = scalar_lea.vmem %s1, %s382
        %s384 = smul.u32 16, %s29
        %s385 = smul.u32 16, %s29
        %p386 = scmp.lt.s32.totalorder %s385, 47
        %s387 = scalar_select %p386, %s385, 47
        %s388 = smul.addr %s387, 4
        %s389 = scalar_lea.vmem %s2, %s388
        %s390 = smul.u32 16, %s29
        %s391 = smul.u32 48, %s30
        %p392 = scmp.lt.s32.totalorder %s391, 47
        %s393 = scalar_select %p392, %s391, 47
        %s394 = smul.addr %s393, 4
        %s395 = scalar_lea.vmem %s3, %s394
        %s396 = smul.u32 48, %s30
        %s397 = smul.u32 16, %s29
        %p399 = scmp.eq.s32.totalorder %s30, 0
        // Predicated region
        $region57: #{tpu_custom_call.1} parent=47 // pred_check
          %p400 = pneg %p399
        $region58: #{tpu_custom_call.1} parent=47 // pred_check_branch
          %402 = sbr.rel (%p400) target = $region60
        $region59: #{tpu_custom_call.1} parent=47 // pred_region
          %403 = vst [vmem:[#allocation2] sm:$0xff] 0.0
          %404 = vst [vmem:[#allocation2 + $0x8] sm:$0xff] 0.0
          %405 = vst [vmem:[#allocation2 + $0x10] sm:$0xff] 0.0
          %406 = vst [vmem:[#allocation2 + $0x18] sm:$0xff] 0.0
          %407 = vst [vmem:[#allocation2 + $0x20] sm:$0xff] 0.0
          %408 = vst [vmem:[#allocation2 + $0x28] sm:$0xff] 0.0
          %409 = vst [vmem:[#allocation2 + $0x30] sm:$0xff] 0.0
          %410 = vst [vmem:[#allocation2 + $0x38] sm:$0xff] 0.0
          %411 = vst [vmem:[#allocation2 + $0x40] sm:$0xff] 0.0
          %412 = vst [vmem:[#allocation2 + $0x48] sm:$0xff] 0.0
          %413 = vst [vmem:[#allocation2 + $0x50] sm:$0xff] 0.0
          %414 = vst [vmem:[#allocation2 + $0x58] sm:$0xff] 0.0
          %415 = vst [vmem:[#allocation2 + $0x60] sm:$0xff] 0.0
          %416 = vst [vmem:[#allocation2 + $0x68] sm:$0xff] 0.0
          %417 = vst [vmem:[#allocation2 + $0x70] sm:$0xff] 0.0
          %418 = vst [vmem:[#allocation2 + $0x78] sm:$0xff] 0.0
        $region60: #{tpu_custom_call.1} parent=47 // pred_fallthru
          _
        %v419 = vld [vmem:[%s327] sm:$0xff]
        %v420 = vld [vmem:[%s327 + $0x8] sm:$0xf]
        %v421 = vld [vmem:[%s327 + $0xc] sm:$0xff]
        %v422 = vld [vmem:[%s327 + $0x14] sm:$0xf]
        %v423 = vld [vmem:[%s327 + $0x18] sm:$0xff]
        %v424 = vld [vmem:[%s327 + $0x20] sm:$0xf]
        %v425 = vld [vmem:[%s327 + $0x24] sm:$0xff]
        %v426 = vld [vmem:[%s327 + $0x2c] sm:$0xf]
        %v427 = vld [vmem:[%s327 + $0x30] sm:$0xff]
        %v428 = vld [vmem:[%s327 + $0x38] sm:$0xf]
        %v429 = vld [vmem:[%s327 + $0x3c] sm:$0xff]
        %v430 = vld [vmem:[%s327 + $0x44] sm:$0xf]
        %v431 = vld [vmem:[%s327 + $0x48] sm:$0xff]
        %v432 = vld [vmem:[%s327 + $0x50] sm:$0xf]
        %v433 = vld [vmem:[%s327 + $0x54] sm:$0xff]
        %v434 = vld [vmem:[%s327 + $0x5c] sm:$0xf]
        %v435 = vld [vmem:[%s327 + $0x60] sm:$0xff]
        %v436 = vld [vmem:[%s327 + $0x68] sm:$0xf]
        %v437 = vld [vmem:[%s327 + $0x6c] sm:$0xff]
        %v438 = vld [vmem:[%s327 + $0x74] sm:$0xf]
        %v439 = vld [vmem:[%s327 + $0x78] sm:$0xff]
        %v440 = vld [vmem:[%s327 + $0x80] sm:$0xf]
        %v441 = vld [vmem:[%s327 + $0x84] sm:$0xff]
        %v442 = vld [vmem:[%s327 + $0x8c] sm:$0xf]
        %v443 = vld [vmem:[%s327 + $0x90] sm:$0xff]
        %v444 = vld [vmem:[%s327 + $0x98] sm:$0xf]
        %v445 = vld [vmem:[%s327 + $0x9c] sm:$0xff]
        %v446 = vld [vmem:[%s327 + $0xa4] sm:$0xf]
        %v447 = vld [vmem:[%s327 + $0xa8] sm:$0xff]
        %v448 = vld [vmem:[%s327 + $0xb0] sm:$0xf]
        %v449 = vld [vmem:[%s327 + $0xb4] sm:$0xff]
        %v450 = vld [vmem:[%s327 + $0xbc] sm:$0xf]
        %v451 = vld [vmem:[%s395] sm:$0xf]
        %v452 = vld [vmem:[%s395 + $0x4] sm:$0xf]
        %v453 = vld [vmem:[%s395 + $0x8] sm:$0xf]
        %v454 = vld [vmem:[%s395 + $0xc] sm:$0xf]
        %v455 = vld [vmem:[%s395 + $0x10] sm:$0xf]
        %v456 = vld [vmem:[%s395 + $0x14] sm:$0xf]
        %v457 = vld [vmem:[%s395 + $0x18] sm:$0xf]
        %v458 = vld [vmem:[%s395 + $0x1c] sm:$0xf]
        %v459 = vld [vmem:[%s395 + $0x20] sm:$0xf]
        %v460 = vld [vmem:[%s395 + $0x24] sm:$0xf]
        %v461 = vld [vmem:[%s395 + $0x28] sm:$0xf]
        %v462 = vld [vmem:[%s395 + $0x2c] sm:$0xf]
        %v463 = vld [vmem:[%s395 + $0x30] sm:$0xf]
        %v464 = vld [vmem:[%s395 + $0x34] sm:$0xf]
        %v465 = vld [vmem:[%s395 + $0x38] sm:$0xf]
        %v466 = vld [vmem:[%s395 + $0x3c] sm:$0xf]
        %v467 = vld [vmem:[%s395 + $0x40] sm:$0xf]
        %v468 = vld [vmem:[%s395 + $0x44] sm:$0xf]
        %v469 = vld [vmem:[%s395 + $0x48] sm:$0xf]
        %v470 = vld [vmem:[%s395 + $0x4c] sm:$0xf]
        %v471 = vld [vmem:[%s395 + $0x50] sm:$0xf]
        %v472 = vld [vmem:[%s395 + $0x54] sm:$0xf]
        %v473 = vld [vmem:[%s395 + $0x58] sm:$0xf]
        %v474 = vld [vmem:[%s395 + $0x5c] sm:$0xf]
        %v475 = vld [vmem:[%s395 + $0x60] sm:$0xf]
        %v476 = vld [vmem:[%s395 + $0x64] sm:$0xf]
        %v477 = vld [vmem:[%s395 + $0x68] sm:$0xf]
        %v478 = vld [vmem:[%s395 + $0x6c] sm:$0xf]
        %v479 = vld [vmem:[%s395 + $0x70] sm:$0xf]
        %v480 = vld [vmem:[%s395 + $0x74] sm:$0xf]
        %v481 = vld [vmem:[%s395 + $0x78] sm:$0xf]
        %v482 = vld [vmem:[%s395 + $0x7c] sm:$0xf]
        %v483 = vld [vmem:[%s395 + $0x80] sm:$0xf]
        %v484 = vld [vmem:[%s395 + $0x84] sm:$0xf]
        %v485 = vld [vmem:[%s395 + $0x88] sm:$0xf]
        %v486 = vld [vmem:[%s395 + $0x8c] sm:$0xf]
        %v487 = vld [vmem:[%s395 + $0x90] sm:$0xf]
        %v488 = vld [vmem:[%s395 + $0x94] sm:$0xf]
        %v489 = vld [vmem:[%s395 + $0x98] sm:$0xf]
        %v490 = vld [vmem:[%s395 + $0x9c] sm:$0xf]
        %v491 = vld [vmem:[%s395 + $0xa0] sm:$0xf]
        %v492 = vld [vmem:[%s395 + $0xa4] sm:$0xf]
        %v493 = vld [vmem:[%s395 + $0xa8] sm:$0xf]
        %v494 = vld [vmem:[%s395 + $0xac] sm:$0xf]
        %v495 = vld [vmem:[%s395 + $0xb0] sm:$0xf]
        %v496 = vld [vmem:[%s395 + $0xb4] sm:$0xf]
        %v497 = vld [vmem:[%s395 + $0xb8] sm:$0xf]
        %v498 = vld [vmem:[%s395 + $0xbc] sm:$0xf]
        %v499 = vld [vmem:[#allocation2] sm:$0xff]
        %v500 = vld [vmem:[#allocation2 + $0x8] sm:$0xff]
        %v501 = vld [vmem:[#allocation2 + $0x10] sm:$0xff]
        %v502 = vld [vmem:[#allocation2 + $0x18] sm:$0xff]
        %v503 = vld [vmem:[#allocation2 + $0x20] sm:$0xff]
        %v504 = vld [vmem:[#allocation2 + $0x28] sm:$0xff]
        %v505 = vld [vmem:[#allocation2 + $0x30] sm:$0xff]
        %v506 = vld [vmem:[#allocation2 + $0x38] sm:$0xff]
        %v507 = vld [vmem:[#allocation2 + $0x40] sm:$0xff]
        %v508 = vld [vmem:[#allocation2 + $0x48] sm:$0xff]
        %v509 = vld [vmem:[#allocation2 + $0x50] sm:$0xff]
        %v510 = vld [vmem:[#allocation2 + $0x58] sm:$0xff]
        %v511 = vld [vmem:[#allocation2 + $0x60] sm:$0xff]
        %v512 = vld [vmem:[#allocation2 + $0x68] sm:$0xff]
        %v513 = vld [vmem:[#allocation2 + $0x70] sm:$0xff]
        %v514 = vld [vmem:[#allocation2 + $0x78] sm:$0xff]
        %v547 = vunpack.c.l.b16 %v419
        %v548 = vunpack.c.h.b16 %v419
        %v549 = vunpack.c.l.b16 %v420
        %v550 = vunpack.c.l.b16 %v421
        %v551 = vunpack.c.h.b16 %v421
        %v552 = vunpack.c.l.b16 %v422
        %v553 = vunpack.c.l.b16 %v423
        %v554 = vunpack.c.h.b16 %v423
        %v555 = vunpack.c.l.b16 %v424
        %v556 = vunpack.c.l.b16 %v425
        %v557 = vunpack.c.h.b16 %v425
        %v558 = vunpack.c.l.b16 %v426
        %v559 = vunpack.c.l.b16 %v427
        %v560 = vunpack.c.h.b16 %v427
        %v561 = vunpack.c.l.b16 %v428
        %v562 = vunpack.c.l.b16 %v429
        %v563 = vunpack.c.h.b16 %v429
        %v564 = vunpack.c.l.b16 %v430
        %v565 = vunpack.c.l.b16 %v431
        %v566 = vunpack.c.h.b16 %v431
        %v567 = vunpack.c.l.b16 %v432
        %v568 = vunpack.c.l.b16 %v433
        %v569 = vunpack.c.h.b16 %v433
        %v570 = vunpack.c.l.b16 %v434
        %v571 = vunpack.c.l.b16 %v435
        %v572 = vunpack.c.h.b16 %v435
        %v573 = vunpack.c.l.b16 %v436
        %v574 = vunpack.c.l.b16 %v437
        %v575 = vunpack.c.h.b16 %v437
        %v576 = vunpack.c.l.b16 %v438
        %v577 = vunpack.c.l.b16 %v439
        %v578 = vunpack.c.h.b16 %v439
        %v579 = vunpack.c.l.b16 %v440
        %v580 = vunpack.c.l.b16 %v441
        %v581 = vunpack.c.h.b16 %v441
        %v582 = vunpack.c.l.b16 %v442
        %v583 = vunpack.c.l.b16 %v443
        %v584 = vunpack.c.h.b16 %v443
        %v585 = vunpack.c.l.b16 %v444
        %v586 = vunpack.c.l.b16 %v445
        %v587 = vunpack.c.h.b16 %v445
        %v588 = vunpack.c.l.b16 %v446
        %v589 = vunpack.c.l.b16 %v447
        %v590 = vunpack.c.h.b16 %v447
        %v591 = vunpack.c.l.b16 %v448
        %v592 = vunpack.c.l.b16 %v449
        %v593 = vunpack.c.h.b16 %v449
        %v594 = vunpack.c.l.b16 %v450
        %v595 = vpack.c.b16 %v550, %v547
        %v596 = vpack.c.b16 %v551, %v548
        %v597 = vpack.c.b16 %v552, %v549
        %v598 = vpack.c.b16 %v556, %v553
        %v599 = vpack.c.b16 %v557, %v554
        %v600 = vpack.c.b16 %v558, %v555
        %v601 = vpack.c.b16 %v562, %v559
        %v602 = vpack.c.b16 %v563, %v560
        %v603 = vpack.c.b16 %v564, %v561
        %v604 = vpack.c.b16 %v568, %v565
        %v605 = vpack.c.b16 %v569, %v566
        %v606 = vpack.c.b16 %v570, %v567
        %v607 = vpack.c.b16 %v574, %v571
        %v608 = vpack.c.b16 %v575, %v572
        %v609 = vpack.c.b16 %v576, %v573
        %v610 = vpack.c.b16 %v580, %v577
        %v611 = vpack.c.b16 %v581, %v578
        %v612 = vpack.c.b16 %v582, %v579
        %v613 = vpack.c.b16 %v586, %v583
        %v614 = vpack.c.b16 %v587, %v584
        %v615 = vpack.c.b16 %v588, %v585
        %v616 = vpack.c.b16 %v592, %v589
        %v617 = vpack.c.b16 %v593, %v590
        %v618 = vpack.c.b16 %v594, %v591
        %v691 = vunpack.c.l.b16 %v451
        %v692 = vunpack.c.l.b16 %v452
        %v693 = vunpack.c.l.b16 %v453
        %v694 = vunpack.c.l.b16 %v454
        %v695 = vunpack.c.l.b16 %v455
        %v696 = vunpack.c.l.b16 %v456
        %v697 = vunpack.c.l.b16 %v457
        %v698 = vunpack.c.l.b16 %v458
        %v699 = vunpack.c.l.b16 %v459
        %v700 = vunpack.c.l.b16 %v460
        %v701 = vunpack.c.l.b16 %v461
        %v702 = vunpack.c.l.b16 %v462
        %v703 = vunpack.c.l.b16 %v463
        %v704 = vunpack.c.l.b16 %v464
        %v705 = vunpack.c.l.b16 %v465
        %v706 = vunpack.c.l.b16 %v466
        %v707 = vunpack.c.l.b16 %v467
        %v708 = vunpack.c.l.b16 %v468
        %v709 = vunpack.c.l.b16 %v469
        %v710 = vunpack.c.l.b16 %v470
        %v711 = vunpack.c.l.b16 %v471
        %v712 = vunpack.c.l.b16 %v472
        %v713 = vunpack.c.l.b16 %v473
        %v714 = vunpack.c.l.b16 %v474
        %v715 = vunpack.c.l.b16 %v475
        %v716 = vunpack.c.l.b16 %v476
        %v717 = vunpack.c.l.b16 %v477
        %v718 = vunpack.c.l.b16 %v478
        %v719 = vunpack.c.l.b16 %v479
        %v720 = vunpack.c.l.b16 %v480
        %v721 = vunpack.c.l.b16 %v481
        %v722 = vunpack.c.l.b16 %v482
        %v723 = vunpack.c.l.b16 %v483
        %v724 = vunpack.c.l.b16 %v484
        %v725 = vunpack.c.l.b16 %v485
        %v726 = vunpack.c.l.b16 %v486
        %v727 = vunpack.c.l.b16 %v487
        %v728 = vunpack.c.l.b16 %v488
        %v729 = vunpack.c.l.b16 %v489
        %v730 = vunpack.c.l.b16 %v490
        %v731 = vunpack.c.l.b16 %v491
        %v732 = vunpack.c.l.b16 %v492
        %v733 = vunpack.c.l.b16 %v493
        %v734 = vunpack.c.l.b16 %v494
        %v735 = vunpack.c.l.b16 %v495
        %v736 = vunpack.c.l.b16 %v496
        %v737 = vunpack.c.l.b16 %v497
        %v738 = vunpack.c.l.b16 %v498
        %v739 = vpack.c.b16 %v692, %v691
        %v740 = vpack.c.b16 %v694, %v693
        %v741 = vpack.c.b16 %v696, %v695
        %v742 = vpack.c.b16 %v698, %v697
        %v743 = vpack.c.b16 %v700, %v699
        %v744 = vpack.c.b16 %v702, %v701
        %v745 = vpack.c.b16 %v704, %v703
        %v746 = vpack.c.b16 %v706, %v705
        %v747 = vpack.c.b16 %v708, %v707
        %v748 = vpack.c.b16 %v710, %v709
        %v749 = vpack.c.b16 %v712, %v711
        %v750 = vpack.c.b16 %v714, %v713
        %v751 = vpack.c.b16 %v716, %v715
        %v752 = vpack.c.b16 %v718, %v717
        %v753 = vpack.c.b16 %v720, %v719
        %v754 = vpack.c.b16 %v722, %v721
        %v755 = vpack.c.b16 %v724, %v723
        %v756 = vpack.c.b16 %v726, %v725
        %v757 = vpack.c.b16 %v728, %v727
        %v758 = vpack.c.b16 %v730, %v729
        %v759 = vpack.c.b16 %v732, %v731
        %v760 = vpack.c.b16 %v734, %v733
        %v761 = vpack.c.b16 %v736, %v735
        %v762 = vpack.c.b16 %v738, %v737
        %787 = vmatprep.subr.bf16.mxu0 0
        %788 = vmatpush1.bf16.msra.mxu0 %v746
        %789 = vmatprep.subr.bf16.mxu0 0
        %790 = vmatpush1.bf16.msra.mxu0 %v745
        %791 = vmatprep.subr.bf16.mxu0 0
        %792 = vmatpush1.bf16.msra.mxu0 %v744
        %793 = vmatprep.subr.bf16.mxu0 0
        %794 = vmatpush1.bf16.msra.mxu0 %v743
        %795 = vmatprep.subr.bf16.mxu0 0
        %796 = vmatpush1.bf16.msra.mxu0 %v742
        %797 = vmatprep.subr.bf16.mxu0 0
        %798 = vmatpush1.bf16.msra.mxu0 %v741
        %799 = vmatprep.subr.bf16.mxu0 0
        %800 = vmatpush1.bf16.msra.mxu0 %v740
        %801 = vmatprep.subr.bf16.mxu0 0
        %802 = vmatpush1.bf16.msra.mxu0 %v739
        %803 = vmatprep.subr.bf16.mxu0 0
        %804 = vmatpush2.bf16.msra.mxu0 %v754
        %805 = vmatprep.subr.bf16.mxu0 0
        %806 = vmatpush2.bf16.msra.mxu0 %v753
        %807 = vmatprep.subr.bf16.mxu0 0
        %808 = vmatpush2.bf16.msra.mxu0 %v752
        %809 = vmatprep.subr.bf16.mxu0 0
        %810 = vmatpush2.bf16.msra.mxu0 %v751
        %811 = vmatprep.subr.bf16.mxu0 0
        %812 = vmatpush2.bf16.msra.mxu0 %v750
        %813 = vmatprep.subr.bf16.mxu0 0
        %814 = vmatpush2.bf16.msra.mxu0 %v749
        %815 = vmatprep.subr.bf16.mxu0 0
        %816 = vmatpush2.bf16.msra.mxu0 %v748
        %817 = vmatprep.subr.bf16.mxu0 0
        %818 = vmatpush2.bf16.msra.mxu0 %v747
        %819 = vmatprep.mubr.bf16.mxu0 %v596
        %820 = vmatmul.mubr.bf16.gmra.mxu0 %v595
        %v821 = vpop.f32.mrf.mxu0
        %v822 = vadd.f32 0.0, %v821
        %v823 = vpop.f32.mrf.mxu0
        %v824 = vpop.f32.mrf.mxu0
        %v825 = vadd.f32 0.0, %v824
        %v826 = vpop.f32.mrf.mxu0
        %827 = vmatprep.mubr.bf16.mxu0 %v599
        %828 = vmatmul.mubr.bf16.gmra.mxu0 %v598
        %v829 = vpop.f32.mrf.mxu0
        %v830 = vadd.f32 0.0, %v829
        %v831 = vpop.f32.mrf.mxu0
        %v832 = vpop.f32.mrf.mxu0
        %v833 = vadd.f32 0.0, %v832
        %v834 = vpop.f32.mrf.mxu0
        %835 = vmatprep.mubr.bf16.mxu0 %v602
        %836 = vmatmul.mubr.bf16.gmra.mxu0 %v601
        %v837 = vpop.f32.mrf.mxu0
        %v838 = vadd.f32 0.0, %v837
        %v839 = vpop.f32.mrf.mxu0
        %v840 = vpop.f32.mrf.mxu0
        %v841 = vadd.f32 0.0, %v840
        %v842 = vpop.f32.mrf.mxu0
        %843 = vmatprep.mubr.bf16.mxu0 %v605
        %844 = vmatmul.mubr.bf16.gmra.mxu0 %v604
        %v845 = vpop.f32.mrf.mxu0
        %v846 = vadd.f32 0.0, %v845
        %v847 = vpop.f32.mrf.mxu0
        %v848 = vpop.f32.mrf.mxu0
        %v849 = vadd.f32 0.0, %v848
        %v850 = vpop.f32.mrf.mxu0
        %851 = vmatprep.mubr.bf16.mxu0 %v608
        %852 = vmatmul.mubr.bf16.gmra.mxu0 %v607
        %v853 = vpop.f32.mrf.mxu0
        %v854 = vadd.f32 0.0, %v853
        %v855 = vpop.f32.mrf.mxu0
        %v856 = vpop.f32.mrf.mxu0
        %v857 = vadd.f32 0.0, %v856
        %v858 = vpop.f32.mrf.mxu0
        %859 = vmatprep.mubr.bf16.mxu0 %v611
        %860 = vmatmul.mubr.bf16.gmra.mxu0 %v610
        %v861 = vpop.f32.mrf.mxu0
        %v862 = vadd.f32 0.0, %v861
        %v863 = vpop.f32.mrf.mxu0
        %v864 = vpop.f32.mrf.mxu0
        %v865 = vadd.f32 0.0, %v864
        %v866 = vpop.f32.mrf.mxu0
        %867 = vmatprep.mubr.bf16.mxu0 %v614
        %868 = vmatmul.mubr.bf16.gmra.mxu0 %v613
        %v869 = vpop.f32.mrf.mxu0
        %v870 = vadd.f32 0.0, %v869
        %v871 = vpop.f32.mrf.mxu0
        %v872 = vpop.f32.mrf.mxu0
        %v873 = vadd.f32 0.0, %v872
        %v874 = vpop.f32.mrf.mxu0
        %875 = vmatprep.mubr.bf16.mxu0 %v617
        %876 = vmatmul.mubr.bf16.gmra.mxu0 %v616
        %v877 = vpop.f32.mrf.mxu0
        %v878 = vadd.f32 0.0, %v877
        %v879 = vpop.f32.mrf.mxu0
        %v880 = vpop.f32.mrf.mxu0
        %v881 = vadd.f32 0.0, %v880
        %v882 = vpop.f32.mrf.mxu0
        %883 = vdwg.mxu0
        %884 = vmatprep.subr.bf16.mxu0 0
        %885 = vmatpush1.bf16.msra.mxu0 %v762
        %886 = vmatprep.subr.bf16.mxu0 0
        %887 = vmatpush1.bf16.msra.mxu0 %v761
        %888 = vmatprep.subr.bf16.mxu0 0
        %889 = vmatpush1.bf16.msra.mxu0 %v760
        %890 = vmatprep.subr.bf16.mxu0 0
        %891 = vmatpush1.bf16.msra.mxu0 %v759
        %892 = vmatprep.subr.bf16.mxu0 0
        %893 = vmatpush1.bf16.msra.mxu0 %v758
        %894 = vmatprep.subr.bf16.mxu0 0
        %895 = vmatpush1.bf16.msra.mxu0 %v757
        %896 = vmatprep.subr.bf16.mxu0 0
        %897 = vmatpush1.bf16.msra.mxu0 %v756
        %898 = vmatprep.subr.bf16.mxu0 0
        %899 = vmatpush1.bf16.msra.mxu0 %v755
        %900 = vmatprep.subr.bf16.mxu0 0
        %901 = vmatpush2.bf16.msra.mxu0 0
        %902 = vmatprep.subr.bf16.mxu0 0
        %903 = vmatpush2.bf16.msra.mxu0 0
        %904 = vmatprep.subr.bf16.mxu0 0
        %905 = vmatpush2.bf16.msra.mxu0 0
        %906 = vmatprep.subr.bf16.mxu0 0
        %907 = vmatpush2.bf16.msra.mxu0 0
        %908 = vmatprep.subr.bf16.mxu0 0
        %909 = vmatpush2.bf16.msra.mxu0 0
        %910 = vmatprep.subr.bf16.mxu0 0
        %911 = vmatpush2.bf16.msra.mxu0 0
        %912 = vmatprep.subr.bf16.mxu0 0
        %913 = vmatpush2.bf16.msra.mxu0 0
        %914 = vmatprep.subr.bf16.mxu0 0
        %915 = vmatpush2.bf16.msra.mxu0 0
        %916 = vmatprep.mubr.bf16.mxu0 0
        %917 = vmatmul.mubr.bf16.gmra.mxu0 %v597
        %v918 = vpop.f32.mrf.mxu0
        %v919 = vadd.f32 %v822, %v918
        %v920 = vpop.f32.mrf.mxu0
        %v921 = vpop.f32.mrf.mxu0
        %v922 = vadd.f32 %v825, %v921
        %v923 = vpop.f32.mrf.mxu0
        %924 = vmatprep.mubr.bf16.mxu0 0
        %925 = vmatmul.mubr.bf16.gmra.mxu0 %v600
        %v926 = vpop.f32.mrf.mxu0
        %v927 = vadd.f32 %v830, %v926
        %v928 = vpop.f32.mrf.mxu0
        %v929 = vpop.f32.mrf.mxu0
        %v930 = vadd.f32 %v833, %v929
        %v931 = vpop.f32.mrf.mxu0
        %932 = vmatprep.mubr.bf16.mxu0 0
        %933 = vmatmul.mubr.bf16.gmra.mxu0 %v603
        %v934 = vpop.f32.mrf.mxu0
        %v935 = vadd.f32 %v838, %v934
        %v936 = vpop.f32.mrf.mxu0
        %v937 = vpop.f32.mrf.mxu0
        %v938 = vadd.f32 %v841, %v937
        %v939 = vpop.f32.mrf.mxu0
        %940 = vmatprep.mubr.bf16.mxu0 0
        %941 = vmatmul.mubr.bf16.gmra.mxu0 %v606
        %v942 = vpop.f32.mrf.mxu0
        %v943 = vadd.f32 %v846, %v942
        %v944 = vpop.f32.mrf.mxu0
        %v945 = vpop.f32.mrf.mxu0
        %v946 = vadd.f32 %v849, %v945
        %v947 = vpop.f32.mrf.mxu0
        %948 = vmatprep.mubr.bf16.mxu0 0
        %949 = vmatmul.mubr.bf16.gmra.mxu0 %v609
        %v950 = vpop.f32.mrf.mxu0
        %v951 = vadd.f32 %v854, %v950
        %v952 = vpop.f32.mrf.mxu0
        %v953 = vpop.f32.mrf.mxu0
        %v954 = vadd.f32 %v857, %v953
        %v955 = vpop.f32.mrf.mxu0
        %956 = vmatprep.mubr.bf16.mxu0 0
        %957 = vmatmul.mubr.bf16.gmra.mxu0 %v612
        %v958 = vpop.f32.mrf.mxu0
        %v959 = vadd.f32 %v862, %v958
        %v960 = vpop.f32.mrf.mxu0
        %v961 = vpop.f32.mrf.mxu0
        %v962 = vadd.f32 %v865, %v961
        %v963 = vpop.f32.mrf.mxu0
        %964 = vmatprep.mubr.bf16.mxu0 0
        %965 = vmatmul.mubr.bf16.gmra.mxu0 %v615
        %v966 = vpop.f32.mrf.mxu0
        %v967 = vadd.f32 %v870, %v966
        %v968 = vpop.f32.mrf.mxu0
        %v969 = vpop.f32.mrf.mxu0
        %v970 = vadd.f32 %v873, %v969
        %v971 = vpop.f32.mrf.mxu0
        %972 = vmatprep.mubr.bf16.mxu0 0
        %973 = vmatmul.mubr.bf16.gmra.mxu0 %v618
        %v974 = vpop.f32.mrf.mxu0
        %v975 = vadd.f32 %v878, %v974
        %v976 = vpop.f32.mrf.mxu0
        %v977 = vpop.f32.mrf.mxu0
        %v978 = vadd.f32 %v881, %v977
        %v979 = vpop.f32.mrf.mxu0
        %980 = vdwg.mxu0
        %v981 = vadd.f32 %v499, %v919
        %v982 = vadd.f32 %v500, %v922
        %v983 = vadd.f32 %v501, %v927
        %v984 = vadd.f32 %v502, %v930
        %v985 = vadd.f32 %v503, %v935
        %v986 = vadd.f32 %v504, %v938
        %v987 = vadd.f32 %v505, %v943
        %v988 = vadd.f32 %v506, %v946
        %v989 = vadd.f32 %v507, %v951
        %v990 = vadd.f32 %v508, %v954
        %v991 = vadd.f32 %v509, %v959
        %v992 = vadd.f32 %v510, %v962
        %v993 = vadd.f32 %v511, %v967
        %v994 = vadd.f32 %v512, %v970
        %v995 = vadd.f32 %v513, %v975
        %v996 = vadd.f32 %v514, %v978
        %997 = vst [vmem:[#allocation2] sm:$0xff] %v981
        %998 = vst [vmem:[#allocation2 + $0x8] sm:$0xff] %v982
        %999 = vst [vmem:[#allocation2 + $0x10] sm:$0xff] %v983
        %1000 = vst [vmem:[#allocation2 + $0x18] sm:$0xff] %v984
        %1001 = vst [vmem:[#allocation2 + $0x20] sm:$0xff] %v985
        %1002 = vst [vmem:[#allocation2 + $0x28] sm:$0xff] %v986
        %1003 = vst [vmem:[#allocation2 + $0x30] sm:$0xff] %v987
        %1004 = vst [vmem:[#allocation2 + $0x38] sm:$0xff] %v988
        %1005 = vst [vmem:[#allocation2 + $0x40] sm:$0xff] %v989
        %1006 = vst [vmem:[#allocation2 + $0x48] sm:$0xff] %v990
        %1007 = vst [vmem:[#allocation2 + $0x50] sm:$0xff] %v991
        %1008 = vst [vmem:[#allocation2 + $0x58] sm:$0xff] %v992
        %1009 = vst [vmem:[#allocation2 + $0x60] sm:$0xff] %v993
        %1010 = vst [vmem:[#allocation2 + $0x68] sm:$0xff] %v994
        %1011 = vst [vmem:[#allocation2 + $0x70] sm:$0xff] %v995
        %1012 = vst [vmem:[#allocation2 + $0x78] sm:$0xff] %v996
        // Predicated region
        $region61: #{tpu_custom_call.1} parent=47 // pred_check
          %p1013 = pneg %p399
        $region62: #{tpu_custom_call.1} parent=47 // pred_check_branch
          %1015 = sbr.rel (%p1013) target = $region64
        $region63: #{tpu_custom_call.1} parent=47 // pred_region
          %v1016 = vld [vmem:[#allocation2] sm:$0xff]
          %v1017 = vld [vmem:[#allocation2 + $0x8] sm:$0xff]
          %v1018 = vld [vmem:[#allocation2 + $0x10] sm:$0xff]
          %v1019 = vld [vmem:[#allocation2 + $0x18] sm:$0xff]
          %v1020 = vld [vmem:[#allocation2 + $0x20] sm:$0xff]
          %v1021 = vld [vmem:[#allocation2 + $0x28] sm:$0xff]
          %v1022 = vld [vmem:[#allocation2 + $0x30] sm:$0xff]
          %v1023 = vld [vmem:[#allocation2 + $0x38] sm:$0xff]
          %v1024 = vld [vmem:[#allocation2 + $0x40] sm:$0xff]
          %v1025 = vld [vmem:[#allocation2 + $0x48] sm:$0xff]
          %v1026 = vld [vmem:[#allocation2 + $0x50] sm:$0xff]
          %v1027 = vld [vmem:[#allocation2 + $0x58] sm:$0xff]
          %v1028 = vld [vmem:[#allocation2 + $0x60] sm:$0xff]
          %v1029 = vld [vmem:[#allocation2 + $0x68] sm:$0xff]
          %v1030 = vld [vmem:[#allocation2 + $0x70] sm:$0xff]
          %v1031 = vld [vmem:[#allocation2 + $0x78] sm:$0xff]
          %v1032 = vld [vmem:[%s383] sm:$0xff]
          %v1033 = vld [vmem:[%s383 + $0x8] sm:$0xff]
          %v1034 = vld [vmem:[%s383 + $0x10] sm:$0xff]
          %v1035 = vld [vmem:[%s383 + $0x18] sm:$0xff]
          %v1036 = vld [vmem:[%s383 + $0x20] sm:$0xff]
          %v1037 = vld [vmem:[%s383 + $0x28] sm:$0xff]
          %v1038 = vld [vmem:[%s383 + $0x30] sm:$0xff]
          %v1039 = vld [vmem:[%s383 + $0x38] sm:$0xff]
          %v1040 = vld [vmem:[%s383 + $0x40] sm:$0xff]
          %v1041 = vld [vmem:[%s383 + $0x48] sm:$0xff]
          %v1042 = vld [vmem:[%s383 + $0x50] sm:$0xff]
          %v1043 = vld [vmem:[%s383 + $0x58] sm:$0xff]
          %v1044 = vld [vmem:[%s383 + $0x60] sm:$0xff]
          %v1045 = vld [vmem:[%s383 + $0x68] sm:$0xff]
          %v1046 = vld [vmem:[%s383 + $0x70] sm:$0xff]
          %v1047 = vld [vmem:[%s383 + $0x78] sm:$0xff]
          %1049 = vset.pattern.permute.xlu0 0
          %1050 = vperm.xlu0 %1049, %v1032
          %v1051 = vpop.permute.xlu0 %1050
          %1054 = vset.pattern.permute.xlu0 0
          %1055 = vperm.xlu0 %1054, %v1033
          %v1056 = vpop.permute.xlu0 %1055
          %1059 = vset.pattern.permute.xlu0 0
          %1060 = vperm.xlu0 %1059, %v1034
          %v1061 = vpop.permute.xlu0 %1060
          %1064 = vset.pattern.permute.xlu0 0
          %1065 = vperm.xlu0 %1064, %v1035
          %v1066 = vpop.permute.xlu0 %1065
          %1069 = vset.pattern.permute.xlu0 0
          %1070 = vperm.xlu0 %1069, %v1036
          %v1071 = vpop.permute.xlu0 %1070
          %1074 = vset.pattern.permute.xlu0 0
          %1075 = vperm.xlu0 %1074, %v1037
          %v1076 = vpop.permute.xlu0 %1075
          %1079 = vset.pattern.permute.xlu0 0
          %1080 = vperm.xlu0 %1079, %v1038
          %v1081 = vpop.permute.xlu0 %1080
          %1084 = vset.pattern.permute.xlu0 0
          %1085 = vperm.xlu0 %1084, %v1039
          %v1086 = vpop.permute.xlu0 %1085
          %1089 = vset.pattern.permute.xlu0 0
          %1090 = vperm.xlu0 %1089, %v1040
          %v1091 = vpop.permute.xlu0 %1090
          %1094 = vset.pattern.permute.xlu0 0
          %1095 = vperm.xlu0 %1094, %v1041
          %v1096 = vpop.permute.xlu0 %1095
          %1099 = vset.pattern.permute.xlu0 0
          %1100 = vperm.xlu0 %1099, %v1042
          %v1101 = vpop.permute.xlu0 %1100
          %1104 = vset.pattern.permute.xlu0 0
          %1105 = vperm.xlu0 %1104, %v1043
          %v1106 = vpop.permute.xlu0 %1105
          %1109 = vset.pattern.permute.xlu0 0
          %1110 = vperm.xlu0 %1109, %v1044
          %v1111 = vpop.permute.xlu0 %1110
          %1114 = vset.pattern.permute.xlu0 0
          %1115 = vperm.xlu0 %1114, %v1045
          %v1116 = vpop.permute.xlu0 %1115
          %1119 = vset.pattern.permute.xlu0 0
          %1120 = vperm.xlu0 %1119, %v1046
          %v1121 = vpop.permute.xlu0 %1120
          %1124 = vset.pattern.permute.xlu0 0
          %1125 = vperm.xlu0 %1124, %v1047
          %v1126 = vpop.permute.xlu0 %1125
          %v1128 = vmul.f32 %v1016, %v1051
          %v1129 = vmul.f32 %v1017, %v1056
          %v1130 = vmul.f32 %v1018, %v1061
          %v1131 = vmul.f32 %v1019, %v1066
          %v1132 = vmul.f32 %v1020, %v1071
          %v1133 = vmul.f32 %v1021, %v1076
          %v1134 = vmul.f32 %v1022, %v1081
          %v1135 = vmul.f32 %v1023, %v1086
          %v1136 = vmul.f32 %v1024, %v1091
          %v1137 = vmul.f32 %v1025, %v1096
          %v1138 = vmul.f32 %v1026, %v1101
          %v1139 = vmul.f32 %v1027, %v1106
          %v1140 = vmul.f32 %v1028, %v1111
          %v1141 = vmul.f32 %v1029, %v1116
          %v1142 = vmul.f32 %v1030, %v1121
          %v1143 = vmul.f32 %v1031, %v1126
          %v1144 = vld [vmem:[%s6] sm:$0x1]
          %v1146 = vlaneseq
          %v1147 = vshrl.u32 %v1146, 7
          %v1148 = vsub.s32 0, %v1147
          %v1149 = vrot.slane %v1144, %v1148
          %v1151 = vadd.f32 %v1128, %v1149
          %v1152 = vadd.f32 %v1129, %v1149
          %v1153 = vadd.f32 %v1130, %v1149
          %v1154 = vadd.f32 %v1131, %v1149
          %v1155 = vadd.f32 %v1132, %v1149
          %v1156 = vadd.f32 %v1133, %v1149
          %v1157 = vadd.f32 %v1134, %v1149
          %v1158 = vadd.f32 %v1135, %v1149
          %v1159 = vadd.f32 %v1136, %v1149
          %v1160 = vadd.f32 %v1137, %v1149
          %v1161 = vadd.f32 %v1138, %v1149
          %v1162 = vadd.f32 %v1139, %v1149
          %v1163 = vadd.f32 %v1140, %v1149
          %v1164 = vadd.f32 %v1141, %v1149
          %v1165 = vadd.f32 %v1142, %v1149
          %v1166 = vadd.f32 %v1143, %v1149
          %v1167 = vld [vmem:[%s389] sm:$0xf]
          %v1168 = vld [vmem:[%s389 + $0x4] sm:$0xf]
          %v1169 = vld [vmem:[%s389 + $0x8] sm:$0xf]
          %v1170 = vld [vmem:[%s389 + $0xc] sm:$0xf]
          %v1171 = vld [vmem:[%s389 + $0x10] sm:$0xf]
          %v1172 = vld [vmem:[%s389 + $0x14] sm:$0xf]
          %v1173 = vld [vmem:[%s389 + $0x18] sm:$0xf]
          %v1174 = vld [vmem:[%s389 + $0x1c] sm:$0xf]
          %v1175 = vld [vmem:[%s389 + $0x20] sm:$0xf]
          %v1176 = vld [vmem:[%s389 + $0x24] sm:$0xf]
          %v1177 = vld [vmem:[%s389 + $0x28] sm:$0xf]
          %v1178 = vld [vmem:[%s389 + $0x2c] sm:$0xf]
          %v1179 = vld [vmem:[%s389 + $0x30] sm:$0xf]
          %v1180 = vld [vmem:[%s389 + $0x34] sm:$0xf]
          %v1181 = vld [vmem:[%s389 + $0x38] sm:$0xf]
          %v1182 = vld [vmem:[%s389 + $0x3c] sm:$0xf]
          %v1183 = vld [vmem:[#allocation6] sm:$0xf]
          %v1184 = vld [vmem:[#allocation6 + $0x4] sm:$0xf]
          %v1185 = vld [vmem:[#allocation6 + $0x8] sm:$0xf]
          %v1186 = vld [vmem:[#allocation6 + $0xc] sm:$0xf]
          %v1187 = vld [vmem:[#allocation6 + $0x10] sm:$0xf]
          %v1188 = vld [vmem:[#allocation6 + $0x14] sm:$0xf]
          %v1189 = vld [vmem:[#allocation6 + $0x18] sm:$0xf]
          %v1190 = vld [vmem:[#allocation6 + $0x1c] sm:$0xf]
          %v1191 = vld [vmem:[#allocation6 + $0x20] sm:$0xf]
          %v1192 = vld [vmem:[#allocation6 + $0x24] sm:$0xf]
          %v1193 = vld [vmem:[#allocation6 + $0x28] sm:$0xf]
          %v1194 = vld [vmem:[#allocation6 + $0x2c] sm:$0xf]
          %v1195 = vld [vmem:[#allocation6 + $0x30] sm:$0xf]
          %v1196 = vld [vmem:[#allocation6 + $0x34] sm:$0xf]
          %v1197 = vld [vmem:[#allocation6 + $0x38] sm:$0xf]
          %v1198 = vld [vmem:[#allocation6 + $0x3c] sm:$0xf]
          %v1199 = vld [vmem:[%s5] sm:$0x1]
          %v1201 = vlaneseq
          %v1202 = vshrl.u32 %v1201, 7
          %v1203 = vsub.s32 0, %v1202
          %v1204 = vrot.slane %v1199, %v1203
          %v1222 = vunpack.c.l.b16 %v1167
          %v1223 = vunpack.c.l.b16 %v1168
          %v1224 = vunpack.c.l.b16 %v1169
          %v1225 = vunpack.c.l.b16 %v1170
          %v1226 = vunpack.c.l.b16 %v1171
          %v1227 = vunpack.c.l.b16 %v1172
          %v1228 = vunpack.c.l.b16 %v1173
          %v1229 = vunpack.c.l.b16 %v1174
          %v1230 = vunpack.c.l.b16 %v1175
          %v1231 = vunpack.c.l.b16 %v1176
          %v1232 = vunpack.c.l.b16 %v1177
          %v1233 = vunpack.c.l.b16 %v1178
          %v1234 = vunpack.c.l.b16 %v1179
          %v1235 = vunpack.c.l.b16 %v1180
          %v1236 = vunpack.c.l.b16 %v1181
          %v1237 = vunpack.c.l.b16 %v1182
          %v1238 = vpack.c.b16 %v1223, %v1222
          %v1239 = vpack.c.b16 %v1225, %v1224
          %v1240 = vpack.c.b16 %v1227, %v1226
          %v1241 = vpack.c.b16 %v1229, %v1228
          %v1242 = vpack.c.b16 %v1231, %v1230
          %v1243 = vpack.c.b16 %v1233, %v1232
          %v1244 = vpack.c.b16 %v1235, %v1234
          %v1245 = vpack.c.b16 %v1237, %v1236
          %v1270 = vunpack.c.l.b16 %v1183
          %v1271 = vunpack.c.l.b16 %v1184
          %v1272 = vunpack.c.l.b16 %v1185
          %v1273 = vunpack.c.l.b16 %v1186
          %v1274 = vunpack.c.l.b16 %v1187
          %v1275 = vunpack.c.l.b16 %v1188
          %v1276 = vunpack.c.l.b16 %v1189
          %v1277 = vunpack.c.l.b16 %v1190
          %v1278 = vunpack.c.l.b16 %v1191
          %v1279 = vunpack.c.l.b16 %v1192
          %v1280 = vunpack.c.l.b16 %v1193
          %v1281 = vunpack.c.l.b16 %v1194
          %v1282 = vunpack.c.l.b16 %v1195
          %v1283 = vunpack.c.l.b16 %v1196
          %v1284 = vunpack.c.l.b16 %v1197
          %v1285 = vunpack.c.l.b16 %v1198
          %v1286 = vpack.c.b16 %v1271, %v1270
          %v1287 = vpack.c.b16 %v1273, %v1272
          %v1288 = vpack.c.b16 %v1275, %v1274
          %v1289 = vpack.c.b16 %v1277, %v1276
          %v1290 = vpack.c.b16 %v1279, %v1278
          %v1291 = vpack.c.b16 %v1281, %v1280
          %v1292 = vpack.c.b16 %v1283, %v1282
          %v1293 = vpack.c.b16 %v1285, %v1284
          %1302 = vmatprep.subr.bf16.mxu0 0
          %1303 = vmatpush1.bf16.msra.mxu0 %v1293
          %1304 = vmatprep.subr.bf16.mxu0 0
          %1305 = vmatpush1.bf16.msra.mxu0 %v1292
          %1306 = vmatprep.subr.bf16.mxu0 0
          %1307 = vmatpush1.bf16.msra.mxu0 %v1291
          %1308 = vmatprep.subr.bf16.mxu0 0
          %1309 = vmatpush1.bf16.msra.mxu0 %v1290
          %1310 = vmatprep.subr.bf16.mxu0 0
          %1311 = vmatpush1.bf16.msra.mxu0 %v1289
          %1312 = vmatprep.subr.bf16.mxu0 0
          %1313 = vmatpush1.bf16.msra.mxu0 %v1288
          %1314 = vmatprep.subr.bf16.mxu0 0
          %1315 = vmatpush1.bf16.msra.mxu0 %v1287
          %1316 = vmatprep.subr.bf16.mxu0 0
          %1317 = vmatpush1.bf16.msra.mxu0 %v1286
          %1318 = vmatprep.subr.bf16.mxu0 0
          %1319 = vmatpush2.bf16.msra.mxu0 0
          %1320 = vmatprep.subr.bf16.mxu0 0
          %1321 = vmatpush2.bf16.msra.mxu0 0
          %1322 = vmatprep.subr.bf16.mxu0 0
          %1323 = vmatpush2.bf16.msra.mxu0 0
          %1324 = vmatprep.subr.bf16.mxu0 0
          %1325 = vmatpush2.bf16.msra.mxu0 0
          %1326 = vmatprep.subr.bf16.mxu0 0
          %1327 = vmatpush2.bf16.msra.mxu0 0
          %1328 = vmatprep.subr.bf16.mxu0 0
          %1329 = vmatpush2.bf16.msra.mxu0 0
          %1330 = vmatprep.subr.bf16.mxu0 0
          %1331 = vmatpush2.bf16.msra.mxu0 0
          %1332 = vmatprep.subr.bf16.mxu0 0
          %1333 = vmatpush2.bf16.msra.mxu0 0
          %1334 = vmatprep.mubr.bf16.mxu0 0
          %1335 = vmatmul.mubr.bf16.gmra.mxu0 %v1238
          %v1336 = vpop.f32.mrf.mxu0
          %v1337 = vadd.f32 %v1204, %v1336
          %v1338 = vpop.f32.mrf.mxu0
          %v1339 = vpop.f32.mrf.mxu0
          %v1340 = vadd.f32 %v1204, %v1339
          %v1341 = vpop.f32.mrf.mxu0
          %1342 = vmatprep.mubr.bf16.mxu0 0
          %1343 = vmatmul.mubr.bf16.gmra.mxu0 %v1239
          %v1344 = vpop.f32.mrf.mxu0
          %v1345 = vadd.f32 %v1204, %v1344
          %v1346 = vpop.f32.mrf.mxu0
          %v1347 = vpop.f32.mrf.mxu0
          %v1348 = vadd.f32 %v1204, %v1347
          %v1349 = vpop.f32.mrf.mxu0
          %1350 = vmatprep.mubr.bf16.mxu0 0
          %1351 = vmatmul.mubr.bf16.gmra.mxu0 %v1240
          %v1352 = vpop.f32.mrf.mxu0
          %v1353 = vadd.f32 %v1204, %v1352
          %v1354 = vpop.f32.mrf.mxu0
          %v1355 = vpop.f32.mrf.mxu0
          %v1356 = vadd.f32 %v1204, %v1355
          %v1357 = vpop.f32.mrf.mxu0
          %1358 = vmatprep.mubr.bf16.mxu0 0
          %1359 = vmatmul.mubr.bf16.gmra.mxu0 %v1241
          %v1360 = vpop.f32.mrf.mxu0
          %v1361 = vadd.f32 %v1204, %v1360
          %v1362 = vpop.f32.mrf.mxu0
          %v1363 = vpop.f32.mrf.mxu0
          %v1364 = vadd.f32 %v1204, %v1363
          %v1365 = vpop.f32.mrf.mxu0
          %1366 = vmatprep.mubr.bf16.mxu0 0
          %1367 = vmatmul.mubr.bf16.gmra.mxu0 %v1242
          %v1368 = vpop.f32.mrf.mxu0
          %v1369 = vadd.f32 %v1204, %v1368
          %v1370 = vpop.f32.mrf.mxu0
          %v1371 = vpop.f32.mrf.mxu0
          %v1372 = vadd.f32 %v1204, %v1371
          %v1373 = vpop.f32.mrf.mxu0
          %1374 = vmatprep.mubr.bf16.mxu0 0
          %1375 = vmatmul.mubr.bf16.gmra.mxu0 %v1243
          %v1376 = vpop.f32.mrf.mxu0
          %v1377 = vadd.f32 %v1204, %v1376
          %v1378 = vpop.f32.mrf.mxu0
          %v1379 = vpop.f32.mrf.mxu0
          %v1380 = vadd.f32 %v1204, %v1379
          %v1381 = vpop.f32.mrf.mxu0
          %1382 = vmatprep.mubr.bf16.mxu0 0
          %1383 = vmatmul.mubr.bf16.gmra.mxu0 %v1244
          %v1384 = vpop.f32.mrf.mxu0
          %v1385 = vadd.f32 %v1204, %v1384
          %v1386 = vpop.f32.mrf.mxu0
          %v1387 = vpop.f32.mrf.mxu0
          %v1388 = vadd.f32 %v1204, %v1387
          %v1389 = vpop.f32.mrf.mxu0
          %1390 = vmatprep.mubr.bf16.mxu0 0
          %1391 = vmatmul.mubr.bf16.gmra.mxu0 %v1245
          %v1392 = vpop.f32.mrf.mxu0
          %v1393 = vadd.f32 %v1204, %v1392
          %v1394 = vpop.f32.mrf.mxu0
          %v1395 = vpop.f32.mrf.mxu0
          %v1396 = vadd.f32 %v1204, %v1395
          %v1397 = vpop.f32.mrf.mxu0
          %1398 = vdwg.mxu0
          %1399 = vst [vmem:[%s376] sm:$0xff] %v1337
          %1400 = vst [vmem:[%s376 + $0x10] sm:$0xff] %v1340
          %1401 = vst [vmem:[%s376 + $0x20] sm:$0xff] %v1345
          %1402 = vst [vmem:[%s376 + $0x30] sm:$0xff] %v1348
          %1403 = vst [vmem:[%s376 + $0x40] sm:$0xff] %v1353
          %1404 = vst [vmem:[%s376 + $0x50] sm:$0xff] %v1356
          %1405 = vst [vmem:[%s376 + $0x60] sm:$0xff] %v1361
          %1406 = vst [vmem:[%s376 + $0x70] sm:$0xff] %v1364
          %1407 = vst [vmem:[%s376 + $0x80] sm:$0xff] %v1369
          %1408 = vst [vmem:[%s376 + $0x90] sm:$0xff] %v1372
          %1409 = vst [vmem:[%s376 + $0xa0] sm:$0xff] %v1377
          %1410 = vst [vmem:[%s376 + $0xb0] sm:$0xff] %v1380
          %1411 = vst [vmem:[%s376 + $0xc0] sm:$0xff] %v1385
          %1412 = vst [vmem:[%s376 + $0xd0] sm:$0xff] %v1388
          %1413 = vst [vmem:[%s376 + $0xe0] sm:$0xff] %v1393
          %1414 = vst [vmem:[%s376 + $0xf0] sm:$0xff] %v1396
          %1415 = vst [vmem:[%s376 + $0x8] sm:$0xff] %v1151
          %1416 = vst [vmem:[%s376 + $0x18] sm:$0xff] %v1152
          %1417 = vst [vmem:[%s376 + $0x28] sm:$0xff] %v1153
          %1418 = vst [vmem:[%s376 + $0x38] sm:$0xff] %v1154
          %1419 = vst [vmem:[%s376 + $0x48] sm:$0xff] %v1155
          %1420 = vst [vmem:[%s376 + $0x58] sm:$0xff] %v1156
          %1421 = vst [vmem:[%s376 + $0x68] sm:$0xff] %v1157
          %1422 = vst [vmem:[%s376 + $0x78] sm:$0xff] %v1158
          %1423 = vst [vmem:[%s376 + $0x88] sm:$0xff] %v1159
          %1424 = vst [vmem:[%s376 + $0x98] sm:$0xff] %v1160
          %1425 = vst [vmem:[%s376 + $0xa8] sm:$0xff] %v1161
          %1426 = vst [vmem:[%s376 + $0xb8] sm:$0xff] %v1162
          %1427 = vst [vmem:[%s376 + $0xc8] sm:$0xff] %v1163
          %1428 = vst [vmem:[%s376 + $0xd8] sm:$0xff] %v1164
          %1429 = vst [vmem:[%s376 + $0xe8] sm:$0xff] %v1165
          %1430 = vst [vmem:[%s376 + $0xf8] sm:$0xff] %v1166
        $region64: #{tpu_custom_call.1} parent=47 // pred_fallthru
          _
        %s1431 = sand.u32 %s214, 1
        %s1432 = scalar_lea.sflag [#allocation5], %s1431
        %s1433 = sand.u32 %s214, 1
        %s1434 = smul.addr %s1433, 256
        %s1435 = scalar_lea.vmem [#allocation8], %s1434
        // Predicated region
        $region65: #{tpu_custom_call.1} parent=47 // pred_check
          %p1436 = pneg %p224
        $region66: #{tpu_custom_call.1} parent=47 // pred_check_branch
          %1438 = sbr.rel (%p1436) target = $region68
        $region67: #{tpu_custom_call.1} parent=47 // pred_region
          %s1439 = smul.u32 16, %s29
          %s1441 = ssub.s32 4096, 4096
          %1442 = vsyncadd %s1432, %s1441
          %s1443 = smul.addr %s1439, 2
          %s1444 = smul.addr %s1443, 128
          %s1445 = scalar_lea.hbm %s7, %s1444
          %s1446 = sshll.u32 %s1435, 4
          %s1447 = int_to_ptr.vmem [resolvable:$true] %s1446
          %1452 = dma.vmem_to_hbm [thread:$0]  %s1447, 4096, %s1445, %s1432, 256, 256, 16
        $region68: #{tpu_custom_call.1} parent=47 // pred_fallthru
          _
      $region48: #{tpu_custom_call.1} parent=5 // pred_fallthru
        _
      %p1453 = scmp.le.s32.totalorder 2, %s20
      // Predicated region
      $region69: #{tpu_custom_call.1} parent=5 // pred_check
        %p1454 = pneg %p1453
      $region70: #{tpu_custom_call.1} parent=5 // pred_check_branch
        %1456 = sbr.rel (%p1454) target = $region72
      $region71: #{tpu_custom_call.1} parent=5 // pred_region
        %s1457 = ssub.s32 %s20, 2
        // Predicated region
        $region73: #{tpu_custom_call.1} parent=71 // pred_check
          %p1458 = pneg %p230
        $region74: #{tpu_custom_call.1} parent=71 // pred_check_branch
          %1460 = sbr.rel (%p1458) target = $region76
        $region75: #{tpu_custom_call.1} parent=71 // pred_region
          %s1461 = sand.u32 %s215, 1
          %s1462 = scalar_lea.sflag [#allocation5], %s1461
          %s1463 = sand.u32 %s215, 1
          %s1464 = smul.addr %s1463, 256
          %s1465 = scalar_lea.vmem [#allocation8], %s1464
          %1466 = dma.done %s1462, 4096
        $region76: #{tpu_custom_call.1} parent=71 // pred_fallthru
          _
      $region72: #{tpu_custom_call.1} parent=5 // pred_fallthru
        _
    $region6: #{tpu_custom_call.1} parent=1 // loop_footer
      %s24 = sadd.s32 1, %s20
    $region7: #{tpu_custom_call.1} parent=1 // loop_footer_branch
      %19 = sbr.rel target = $region3
    $region8: #{tpu_custom_call.1} parent=1 // loop_exit
      _
    %1467 = vsyncpa [#allocation4], 1
    %s1468 = scalar_lea.sflag [#allocation4], 1
    %1469 = vsyncpa %s1468, 1
    %1470 = vsyncpa [#allocation7], 1
    %1471 = vsyncpa [#allocation5], 1
    %s1472 = scalar_lea.sflag [#allocation5], 1
    %1473 = vsyncpa %s1472, 1

</llo_original>
